<compile_context>
chip_gen: v7x
topology: tpu7x:2x2x1
jax: 0.10.0
libtpu: 0.0.40
codegen_flags: <defaults>
</compile_context>

<pallas_src>
import functools
import math

import jax
import jax.numpy as jnp
from jax.experimental import pallas as pl
from jax.experimental.pallas import tpu as pltpu

DROPOUT_P = 0.2


def _attention_kernel(q_ref, k_ref, v_ref, *rest, inv_scale, dropout_p):
    # q_ref/k_ref/v_ref: (G, S, D) VMEM tiles; optional u_ref: (G, S, S) uniforms.
    if dropout_p > 0.0:
        u_ref, o_ref = rest
    else:
        (o_ref,) = rest

    # Fold the scale into q: (G,S,D) multiply instead of scaling (G,S,S) scores.
    q = q_ref[...] * jnp.float32(1.0 / inv_scale)
    k = k_ref[...]
    v = v_ref[...]

    # scores: (G, S, S), contracting D directly (no materialized transpose).
    s = jnp.einsum("gqd,gkd->gqk", q, k, preferred_element_type=jnp.float32)

    # numerically stable softmax over the last axis
    m = jnp.max(s, axis=-1, keepdims=True)
    e = jnp.exp(s - m)
    denom = jnp.sum(e, axis=-1, keepdims=True)

    if dropout_p > 0.0:
        # Fuse the 1/(1-p) dropout rescale into the per-row reciprocal
        # (an (G,S,1) op instead of an extra (G,S,S) multiply).
        inv_l = jnp.float32(1.0 / (1.0 - dropout_p)) / denom
        keep = u_ref[...] >= jnp.float32(dropout_p)          # keep w.p. 1-p
        p_attn = jnp.where(keep, e * inv_l, jnp.float32(0.0))
    else:
        p_attn = e / denom

    out = jnp.einsum("gqk,gkd->gqd", p_attn, v, preferred_element_type=jnp.float32)
    o_ref[...] = out.astype(o_ref.dtype)


def _pick_group(bh, max_group=16):
    """Largest divisor of bh <= max_group that still leaves >= 2 grid steps."""
    best = 1
    for g in range(1, min(bh, max_group) + 1):
        if bh % g == 0 and (bh // g >= 2 or bh == 1):
            best = g
    return best


def sdpa_dropout(q, k, v, *, inv_scale_factor, dropout_p=DROPOUT_P,
                 key=None, group=None):
    """q, k, v: (B, H, S, D) float32. Returns (B, H, S, D)."""
    B, H, S, D = q.shape
    BH = B * H
    G = _pick_group(BH) if group is None else group
    assert BH % G == 0, "group size must divide B*H"
    grid = (BH // G,)

    qf = q.reshape(BH, S, D)
    kf = k.reshape(BH, S, D)
    vf = v.reshape(BH, S, D)

    qkv_spec = pl.BlockSpec((G, S, D), lambda i: (i, 0, 0))
    in_specs = [qkv_spec, qkv_spec, qkv_spec]
    inputs = [qf, kf, vf]

    if dropout_p > 0.0:
        if key is None:
            key = jax.random.PRNGKey(0)
        # TODO(synk): RNG drawn in the wrapper (jax.random) instead of the TPU
        # hardware PRNG; pltpu.prng_* has no interpret/CPU lowering.
        u = jax.random.uniform(key, (BH, S, S), dtype=jnp.float32)
        in_specs.append(pl.BlockSpec((G, S, S), lambda i: (i, 0, 0)))
        inputs.append(u)

    kernel = functools.partial(_attention_kernel,
                               inv_scale=float(inv_scale_factor),
                               dropout_p=float(dropout_p))

    out = pl.pallas_call(
        kernel,
        out_shape=jax.ShapeDtypeStruct((BH, S, D), q.dtype),
        grid=grid,
        in_specs=in_specs,
        out_specs=pl.BlockSpec((G, S, D), lambda i: (i, 0, 0)),
        compiler_params=pltpu.CompilerParams(
            dimension_semantics=("parallel",)),
    )(*inputs)
    return out.reshape(B, H, S, D)


def sdpa_reference(q, k, v, *, inv_scale_factor, dropout_p, key):
    """Pure-JAX reference matching the kernel's dropout mask exactly."""
    B, H, S, D = q.shape
    s = jnp.einsum("bhqd,bhkd->bhqk", q, k) / inv_scale_factor
    p = jax.nn.softmax(s, axis=-1)
    if dropout_p > 0.0:
        u = jax.random.uniform(key, (B * H, S, S), dtype=jnp.float32)
        u = u.reshape(B, H, S, S)
        p = jnp.where(u >= dropout_p, p / (1.0 - dropout_p), 0.0)
    return jnp.einsum("bhqk,bhkd->bhqd", p, v)


if __name__ == "__main__":
    # Small shapes consistent with the module's (batch, heads, seq, head_dim)
    # tensors (original: (5, 16, 64, 64)); here B=2, H=4, S=64, D=64.
    B, H, S, D = 2, 4, 64, 64
    root = jax.random.PRNGKey(0)
    kq, kk, kv, kdrop = jax.random.split(root, 4)
    q1 = jax.random.normal(kq, (B, H, S, D), dtype=jnp.float32)
    k1 = jax.random.normal(kk, (B, H, S, D), dtype=jnp.float32)
    v1 = jax.random.normal(kv, (B, H, S, D), dtype=jnp.float32)

    inv_scale_factor = math.sqrt(D)   # standard 1/sqrt(d) scaling

    out = sdpa_dropout(q1, k1, v1,
                       inv_scale_factor=inv_scale_factor,
                       dropout_p=DROPOUT_P,
                       key=kdrop)
    out = jax.block_until_ready(out)

    ref = sdpa_reference(q1, k1, v1,
                         inv_scale_factor=inv_scale_factor,
                         dropout_p=DROPOUT_P,
                         key=kdrop)
    ref = jax.block_until_ready(ref)

    assert out.shape == (B, H, S, D)
    assert bool(jnp.all(jnp.isfinite(out)))
    max_err = float(jnp.max(jnp.abs(out - ref)))
    # loose tolerance: TPU default matmul precision differs from the XLA ref
    assert max_err < 1e-1, f"max abs error too large: {max_err}"
    print("KERNEL_OK")
</pallas_src>

<mosaic_0001>
module attributes {stable_mosaic.version = 11 : i64} {
  func.func @_attention_kernel(%arg0: i32, %arg1: memref<4x64x64xf32, #tpu.memory_space<vmem>>, %arg2: memref<4x64x64xf32, #tpu.memory_space<vmem>>, %arg3: memref<4x64x64xf32, #tpu.memory_space<vmem>>, %arg4: memref<4x64x64xf32, #tpu.memory_space<vmem>>, %arg5: memref<4x64x64xf32, #tpu.memory_space<vmem>>) attributes {dimension_semantics = [#tpu.dimension_semantics<parallel>], iteration_bounds = array<i64: 2>, scalar_prefetch = 0 : i64, scratch_operands = 0 : i64, tpu.core_type = #tpu.core_type<tc>, window_params = [{transform_indices = @transform_0, window_bounds = array<i64: 4, 64, 64>}, {transform_indices = @transform_1, window_bounds = array<i64: 4, 64, 64>}, {transform_indices = @transform_2, window_bounds = array<i64: 4, 64, 64>}, {transform_indices = @transform_3, window_bounds = array<i64: 4, 64, 64>}, {transform_indices = @transform_4, window_bounds = array<i64: 4, 64, 64>}]} {
    %c0 = arith.constant 0 : index
    %c0_0 = arith.constant 0 : index
    %c0_1 = arith.constant 0 : index
    %0 = vector.load %arg1[%c0, %c0_0, %c0_1] : memref<4x64x64xf32, #tpu.memory_space<vmem>>, vector<4x64x64xf32>
    %cst = arith.constant 1.250000e-01 : f32
    %1 = vector.broadcast %cst : f32 to vector<4x64x64xf32>
    %2 = arith.mulf %0, %1 : vector<4x64x64xf32>
    %c0_2 = arith.constant 0 : index
    %c0_3 = arith.constant 0 : index
    %c0_4 = arith.constant 0 : index
    %3 = vector.load %arg2[%c0_2, %c0_3, %c0_4] : memref<4x64x64xf32, #tpu.memory_space<vmem>>, vector<4x64x64xf32>
    %c0_5 = arith.constant 0 : index
    %c0_6 = arith.constant 0 : index
    %c0_7 = arith.constant 0 : index
    %4 = vector.load %arg3[%c0_5, %c0_6, %c0_7] : memref<4x64x64xf32, #tpu.memory_space<vmem>>, vector<4x64x64xf32>
    "tpu.trace_start"() <{level = 10 : i32, message = "gqd,gkd->gqk"}> : () -> ()
    %cst_8 = arith.constant dense<0.000000e+00> : vector<4x64x64xf32>
    %5 = tpu.matmul %2, %3, %cst_8 {dimension_numbers = #tpu.dot_dimension_numbers<[2], [2], [1], [1], [0, 0, 0, 1, 1, 1], [0], [0]>} : vector<4x64x64xf32>, vector<4x64x64xf32>, vector<4x64x64xf32> -> vector<4x64x64xf32>
    "tpu.trace_stop"() : () -> ()
    %cst_9 = arith.constant dense<0xFF800000> : vector<4x64xf32>
    %6 = vector.multi_reduction <maximumf>, %5, %cst_9 [2] : vector<4x64x64xf32> to vector<4x64xf32>
    %7 = vector.shape_cast %6 : vector<4x64xf32> to vector<4x64x1xf32>
    %8 = vector.broadcast %7 : vector<4x64x1xf32> to vector<4x64x64xf32>
    %9 = arith.subf %5, %8 : vector<4x64x64xf32>
    %10 = math.exp %9 : vector<4x64x64xf32>
    %cst_10 = arith.constant dense<0.000000e+00> : vector<4x64xf32>
    %11 = vector.multi_reduction <add>, %10, %cst_10 [2] : vector<4x64x64xf32> to vector<4x64xf32>
    %12 = vector.shape_cast %11 : vector<4x64xf32> to vector<4x64x1xf32>
    %cst_11 = arith.constant 1.250000e+00 : f32
    %13 = vector.broadcast %cst_11 : f32 to vector<4x64x1xf32>
    %14 = arith.divf %13, %12 : vector<4x64x1xf32>
    %c0_12 = arith.constant 0 : index
    %c0_13 = arith.constant 0 : index
    %c0_14 = arith.constant 0 : index
    %15 = vector.load %arg4[%c0_12, %c0_13, %c0_14] : memref<4x64x64xf32, #tpu.memory_space<vmem>>, vector<4x64x64xf32>
    %cst_15 = arith.constant 2.000000e-01 : f32
    %16 = vector.broadcast %cst_15 : f32 to vector<4x64x64xf32>
    %17 = arith.cmpf oge, %15, %16 : vector<4x64x64xf32>
    %18 = vector.broadcast %14 : vector<4x64x1xf32> to vector<4x64x64xf32>
    %19 = arith.mulf %10, %18 : vector<4x64x64xf32>
    %cst_16 = arith.constant 0.000000e+00 : f32
    %20 = vector.broadcast %cst_16 : f32 to vector<4x64x64xf32>
    %21 = arith.select %17, %19, %20 : vector<4x64x64xi1>, vector<4x64x64xf32>
    "tpu.trace_start"() <{level = 10 : i32, message = "gqk,gkd->gqd"}> : () -> ()
    %cst_17 = arith.constant dense<0.000000e+00> : vector<4x64x64xf32>
    %22 = tpu.matmul %21, %4, %cst_17 {dimension_numbers = #tpu.dot_dimension_numbers<[2], [1], [1], [2], [0, 0, 0, 1, 1, 2], [0], [0]>} : vector<4x64x64xf32>, vector<4x64x64xf32>, vector<4x64x64xf32> -> vector<4x64x64xf32>
    "tpu.trace_stop"() : () -> ()
    %c0_18 = arith.constant 0 : index
    %c0_19 = arith.constant 0 : index
    %c0_20 = arith.constant 0 : index
    %23 = vector.load %arg5[%c0_18, %c0_19, %c0_20] : memref<4x64x64xf32, #tpu.memory_space<vmem>>, vector<4x64x64xf32>
    tpu.vector_store %arg5[%c0_18, %c0_19, %c0_20], %22 {strides = array<i32>} : memref<4x64x64xf32, #tpu.memory_space<vmem>>, vector<4x64x64xf32>,
    return
  }
  func.func @transform_0(%arg0: i32) -> (i32, i32, i32) {
    %c0_i32 = arith.constant 0 : i32
    %c0_i32_0 = arith.constant 0 : i32
    %c0_i32_1 = arith.constant 0 : i32
    return %arg0, %c0_i32, %c0_i32_0 : i32, i32, i32
  }
  func.func @transform_1(%arg0: i32) -> (i32, i32, i32) {
    %c0_i32 = arith.constant 0 : i32
    %c0_i32_0 = arith.constant 0 : i32
    %c0_i32_1 = arith.constant 0 : i32
    return %arg0, %c0_i32, %c0_i32_0 : i32, i32, i32
  }
  func.func @transform_2(%arg0: i32) -> (i32, i32, i32) {
    %c0_i32 = arith.constant 0 : i32
    %c0_i32_0 = arith.constant 0 : i32
    %c0_i32_1 = arith.constant 0 : i32
    return %arg0, %c0_i32, %c0_i32_0 : i32, i32, i32
  }
  func.func @transform_3(%arg0: i32) -> (i32, i32, i32) {
    %c0_i32 = arith.constant 0 : i32
    %c0_i32_0 = arith.constant 0 : i32
    %c0_i32_1 = arith.constant 0 : i32
    return %arg0, %c0_i32, %c0_i32_0 : i32, i32, i32
  }
  func.func @transform_4(%arg0: i32) -> (i32, i32, i32) {
    %c0_i32 = arith.constant 0 : i32
    %c0_i32_0 = arith.constant 0 : i32
    %c0_i32_1 = arith.constant 0 : i32
    return %arg0, %c0_i32, %c0_i32_0 : i32, i32, i32
  }
}

</mosaic_0001>

<llo_original>
// kernel: tpu_custom_call.1
$region0: #{tpu_custom_call.1}
  #allocation0 [shape = 'u32[]', space=smem, size = 0x4, offset = 0x4, fixed_abs, tag = 'smem constant byte address 0x4 - core index']
  #allocation1 [shape = 'u32[144,128]{1,0:T(1,128)}', space=vmem, size = 0x12000, scoped, tag = 'internal scratch']
  %s0 = inlined_call_operand.hbm [shape: f32[8,64,64], index: 0, kind: input, shape index: {}]
  %s1 = inlined_call_operand.hbm [shape: f32[8,64,64], index: 1, kind: input, shape index: {}]
  %s2 = inlined_call_operand.hbm [shape: f32[8,64,64], index: 2, kind: input, shape index: {}]
  %s3 = inlined_call_operand.hbm [shape: f32[8,64,64], index: 3, kind: input, shape index: {}]
  %s4 = inlined_call_operand.hbm [shape: f32[8,64,64], index: 4, kind: output, shape index: {}]
  %s5 = sld [smem:[#allocation0]]
  $region65: #{tpu_custom_call.1} parent=0
    _
  %s7 = ssub.s32 1, %s5
  %s8 = scalar_select 0, %s7, %s5
  $region1: #{tpu_custom_call.1} parent=0
    #allocation2 [shape = 'u8[262144]{0}', space=vmem, size = 0x40000, scoped, tag = 'input window, operand 0']
    #allocation3 [shape = 's32[2]{0}', space=sflag, size = 0x8, scoped, tag = 'scoped memory for tpu_custom_call.1']
    #allocation4 [shape = 's32[2]{0}', space=sflag, size = 0x8, scoped, tag = 'scoped memory for tpu_custom_call.1']
    #allocation5 [shape = 'u8[262144]{0}', space=vmem, size = 0x40000, scoped, tag = 'input window, operand 1']
    #allocation6 [shape = 's32[2]{0}', space=sflag, size = 0x8, scoped, tag = 'scoped memory for tpu_custom_call.1']
    #allocation7 [shape = 'u8[262144]{0}', space=vmem, size = 0x40000, scoped, tag = 'input window, operand 2']
    #allocation8 [shape = 'u8[262144]{0}', space=vmem, size = 0x40000, scoped, tag = 'input window, operand 3']
    #allocation9 [shape = 's32[2]{0}', space=sflag, size = 0x8, scoped, tag = 'scoped memory for tpu_custom_call.1']
    #allocation10 [shape = 'u8[262144]{0}', space=vmem, size = 0x40000, scoped, tag = 'output window, operand 0']
    %9 = vsyncpa [#allocation3], 0
    %s10 = scalar_lea.sflag [#allocation3], 1
    %11 = vsyncpa %s10, 0
    %12 = vsyncpa [#allocation6], 0
    %s13 = scalar_lea.sflag [#allocation6], 1
    %14 = vsyncpa %s13, 0
    %15 = vsyncpa [#allocation9], 0
    %s16 = scalar_lea.sflag [#allocation9], 1
    %17 = vsyncpa %s16, 0
    %18 = vsyncpa [#allocation4], 0
    %s19 = scalar_lea.sflag [#allocation4], 1
    %20 = vsyncpa %s19, 0
    loop: start=0, step=1, limit=4
    $region2: #{tpu_custom_call.1} parent=1 // loop_pre_header
      _
    $region3: #{tpu_custom_call.1} parent=1 // loop_header
      %s22 = sphi 0, %s26
      %p23 = scmp.ge.s32.totalorder %s22, 4
      %s32 = sphi 0, %s34
      %s35 = sphi 0, %s32
      %s36 = sphi 0, %s35
      %s52 = sphi 0, %s36
      %s58 = sphi 0, %s60
      %s61 = sphi 0, %s58
      %s62 = sphi 0, %s61
      %s78 = sphi 0, %s62
      %s84 = sphi 0, %s86
      %s87 = sphi 0, %s84
      %s88 = sphi 0, %s87
      %s104 = sphi 0, %s88
      %s110 = sphi 0, %s112
      %s113 = sphi 0, %s110
      %s114 = sphi 0, %s113
      %s130 = sphi 0, %s114
      %s136 = sphi 0, %s138
      %s139 = sphi 0, %s136
      %s140 = sphi 0, %s139
      %s156 = sphi 0, %s140
    $region4: #{tpu_custom_call.1} parent=1 // loop_header_branch
      %25 = sbr.rel (%p23) target = $region8
    $region5: #{tpu_custom_call.1} parent=1 // loop_body
      %s27 = ssub.s32 %s22, 1
      %s28 = ssub.s32 %s22, 2
      %s29 = sadd.s32 %s22, 1
      %s30 = ssub.s32 %s22, %s29
      %p31 = scmp.eq.s32.totalorder %s30, 0
      %s33 = sadd.s32 %s32, 1
      %s34 = scalar_select %p31, %s32, %s33
      %p37 = pneg %p31
      %p38 = scmp.eq.s32.totalorder %s22, 1
      %p39 = por %p37, %p38
      %p40 = scmp.ne.s32.totalorder %s32, %s35
      %p41 = scmp.eq.s32.totalorder %s22, 0
      %p42 = por %p40, %p41
      %p43 = scmp.ne.s32.totalorder %s32, %s35
      %p44 = scmp.eq.s32.totalorder %s27, 1
      %p45 = por %p43, %p44
      %p46 = scmp.ne.s32.totalorder %s35, %s36
      %p47 = scmp.eq.s32.totalorder %s27, 0
      %p48 = por %p46, %p47
      %p49 = scmp.ne.s32.totalorder %s35, %s36
      %p50 = scmp.eq.s32.totalorder %s28, 1
      %p51 = por %p49, %p50
      %p53 = scmp.ne.s32.totalorder %s36, %s52
      %p54 = scmp.eq.s32.totalorder %s28, 0
      %p55 = por %p53, %p54
      %s56 = ssub.s32 %s22, %s29
      %p57 = scmp.eq.s32.totalorder %s56, 0
      %s59 = sadd.s32 %s58, 1
      %s60 = scalar_select %p57, %s58, %s59
      %p63 = pneg %p57
      %p64 = scmp.eq.s32.totalorder %s22, 1
      %p65 = por %p63, %p64
      %p66 = scmp.ne.s32.totalorder %s58, %s61
      %p67 = scmp.eq.s32.totalorder %s22, 0
      %p68 = por %p66, %p67
      %p69 = scmp.ne.s32.totalorder %s58, %s61
      %p70 = scmp.eq.s32.totalorder %s27, 1
      %p71 = por %p69, %p70
      %p72 = scmp.ne.s32.totalorder %s61, %s62
      %p73 = scmp.eq.s32.totalorder %s27, 0
      %p74 = por %p72, %p73
      %p75 = scmp.ne.s32.totalorder %s61, %s62
      %p76 = scmp.eq.s32.totalorder %s28, 1
      %p77 = por %p75, %p76
      %p79 = scmp.ne.s32.totalorder %s62, %s78
      %p80 = scmp.eq.s32.totalorder %s28, 0
      %p81 = por %p79, %p80
      %s82 = ssub.s32 %s22, %s29
      %p83 = scmp.eq.s32.totalorder %s82, 0
      %s85 = sadd.s32 %s84, 1
      %s86 = scalar_select %p83, %s84, %s85
      %p89 = pneg %p83
      %p90 = scmp.eq.s32.totalorder %s22, 1
      %p91 = por %p89, %p90
      %p92 = scmp.ne.s32.totalorder %s84, %s87
      %p93 = scmp.eq.s32.totalorder %s22, 0
      %p94 = por %p92, %p93
      %p95 = scmp.ne.s32.totalorder %s84, %s87
      %p96 = scmp.eq.s32.totalorder %s27, 1
      %p97 = por %p95, %p96
      %p98 = scmp.ne.s32.totalorder %s87, %s88
      %p99 = scmp.eq.s32.totalorder %s27, 0
      %p100 = por %p98, %p99
      %p101 = scmp.ne.s32.totalorder %s87, %s88
      %p102 = scmp.eq.s32.totalorder %s28, 1
      %p103 = por %p101, %p102
      %p105 = scmp.ne.s32.totalorder %s88, %s104
      %p106 = scmp.eq.s32.totalorder %s28, 0
      %p107 = por %p105, %p106
      %s108 = ssub.s32 %s22, %s29
      %p109 = scmp.eq.s32.totalorder %s108, 0
      %s111 = sadd.s32 %s110, 1
      %s112 = scalar_select %p109, %s110, %s111
      %p115 = pneg %p109
      %p116 = scmp.eq.s32.totalorder %s22, 1
      %p117 = por %p115, %p116
      %p118 = scmp.ne.s32.totalorder %s110, %s113
      %p119 = scmp.eq.s32.totalorder %s22, 0
      %p120 = por %p118, %p119
      %p121 = scmp.ne.s32.totalorder %s110, %s113
      %p122 = scmp.eq.s32.totalorder %s27, 1
      %p123 = por %p121, %p122
      %p124 = scmp.ne.s32.totalorder %s113, %s114
      %p125 = scmp.eq.s32.totalorder %s27, 0
      %p126 = por %p124, %p125
      %p127 = scmp.ne.s32.totalorder %s113, %s114
      %p128 = scmp.eq.s32.totalorder %s28, 1
      %p129 = por %p127, %p128
      %p131 = scmp.ne.s32.totalorder %s114, %s130
      %p132 = scmp.eq.s32.totalorder %s28, 0
      %p133 = por %p131, %p132
      %s134 = ssub.s32 %s22, %s29
      %p135 = scmp.eq.s32.totalorder %s134, 0
      %s137 = sadd.s32 %s136, 1
      %s138 = scalar_select %p135, %s136, %s137
      %p141 = pneg %p135
      %p142 = scmp.eq.s32.totalorder %s22, 1
      %p143 = por %p141, %p142
      %p144 = scmp.ne.s32.totalorder %s136, %s139
      %p145 = scmp.eq.s32.totalorder %s22, 0
      %p146 = por %p144, %p145
      %p147 = scmp.ne.s32.totalorder %s136, %s139
      %p148 = scmp.eq.s32.totalorder %s27, 1
      %p149 = por %p147, %p148
      %p150 = scmp.ne.s32.totalorder %s139, %s140
      %p151 = scmp.eq.s32.totalorder %s27, 0
      %p152 = por %p150, %p151
      %p153 = scmp.ne.s32.totalorder %s139, %s140
      %p154 = scmp.eq.s32.totalorder %s28, 1
      %p155 = por %p153, %p154
      %p157 = scmp.ne.s32.totalorder %s140, %s156
      %p158 = scmp.eq.s32.totalorder %s28, 0
      %p159 = por %p157, %p158
      %p160 = scmp.le.s32.totalorder 1, %s22
      %p161 = scmp.lt.s32.totalorder %s22, 3
      %p162 = pnand %p160, %p161
      %p163 = pneg %p162
      // Predicated region
      $region9: #{tpu_custom_call.1} parent=5 // pred_check
        _
      $region10: #{tpu_custom_call.1} parent=5 // pred_check_branch
        %165 = sbr.rel (%p162) target = $region12
      $region11: #{tpu_custom_call.1} parent=5 // pred_region
        %s166 = ssub.s32 %s22, 1
      $region12: #{tpu_custom_call.1} parent=5 // pred_fallthru
        _
      %p167 = scmp.lt.s32.totalorder %s22, 2
      // Predicated region
      $region13: #{tpu_custom_call.1} parent=5 // pred_check
        %p168 = pneg %p167
      $region14: #{tpu_custom_call.1} parent=5 // pred_check_branch
        %170 = sbr.rel (%p168) target = $region16
      $region15: #{tpu_custom_call.1} parent=5 // pred_region
        // Predicated region
        $region17: #{tpu_custom_call.1} parent=15 // pred_check
          %p171 = pneg %p42
        $region18: #{tpu_custom_call.1} parent=15 // pred_check_branch
          %173 = sbr.rel (%p171) target = $region20
        $region19: #{tpu_custom_call.1} parent=15 // pred_region
          %s174 = sand.u32 %s32, 1
          %s175 = scalar_lea.sflag [#allocation3], %s174
          %s176 = sand.u32 %s32, 1
          %s177 = smul.addr %s176, 256
          %s178 = scalar_lea.vmem [#allocation2], %s177
          %s179 = smul.u32 4, %s22
          %s181 = ssub.s32 4096, 4096
          %182 = vsyncadd %s175, %s181
          %s183 = smul.addr %s179, 8
          %s184 = smul.addr %s183, 128
          %s185 = scalar_lea.hbm %s0, %s184
          %s186 = sshll.u32 %s178, 4
          %s187 = int_to_ptr.vmem [resolvable:$true] %s186
          %192 = dma.hbm_to_vmem [thread:$0]  %s185, 4096, %s187, %s175, 128, 128, 8
        $region20: #{tpu_custom_call.1} parent=15 // pred_fallthru
          _
        // Predicated region
        $region21: #{tpu_custom_call.1} parent=15 // pred_check
          %p193 = pneg %p68
        $region22: #{tpu_custom_call.1} parent=15 // pred_check_branch
          %195 = sbr.rel (%p193) target = $region24
        $region23: #{tpu_custom_call.1} parent=15 // pred_region
          %s196 = sand.u32 %s22, 1
          %s197 = scalar_lea.sflag [#allocation6], %s196
          %s198 = sand.u32 %s58, 1
          %s199 = smul.addr %s198, 256
          %s200 = scalar_lea.vmem [#allocation5], %s199
          %s201 = smul.u32 4, %s22
          %s203 = ssub.s32 4096, 4096
          %204 = vsyncadd %s197, %s203
          %s205 = smul.addr %s201, 8
          %s206 = smul.addr %s205, 128
          %s207 = scalar_lea.hbm %s1, %s206
          %s208 = sshll.u32 %s200, 4
          %s209 = int_to_ptr.vmem [resolvable:$true] %s208
          %214 = dma.hbm_to_vmem [thread:$0]  %s207, 4096, %s209, %s197, 128, 128, 8
        $region24: #{tpu_custom_call.1} parent=15 // pred_fallthru
          _
        // Predicated region
        $region25: #{tpu_custom_call.1} parent=15 // pred_check
          %p215 = pneg %p94
        $region26: #{tpu_custom_call.1} parent=15 // pred_check_branch
          %217 = sbr.rel (%p215) target = $region28
        $region27: #{tpu_custom_call.1} parent=15 // pred_region
          %s218 = sand.u32 %s22, 1
          %s219 = scalar_lea.sflag [#allocation6], %s218
          %s220 = sand.u32 %s84, 1
          %s221 = smul.addr %s220, 256
          %s222 = scalar_lea.vmem [#allocation7], %s221
          %s223 = smul.u32 4, %s22
          %s225 = ssub.s32 4096, 4096
          %226 = vsyncadd %s219, %s225
          %s227 = smul.addr %s223, 8
          %s228 = smul.addr %s227, 128
          %s229 = scalar_lea.hbm %s2, %s228
          %s230 = sshll.u32 %s222, 4
          %s231 = int_to_ptr.vmem [resolvable:$true] %s230
          %236 = dma.hbm_to_vmem [thread:$0]  %s229, 4096, %s231, %s219, 128, 128, 8
        $region28: #{tpu_custom_call.1} parent=15 // pred_fallthru
          _
        // Predicated region
        $region29: #{tpu_custom_call.1} parent=15 // pred_check
          %p237 = pneg %p120
        $region30: #{tpu_custom_call.1} parent=15 // pred_check_branch
          %239 = sbr.rel (%p237) target = $region32
        $region31: #{tpu_custom_call.1} parent=15 // pred_region
          %s240 = sand.u32 %s110, 1
          %s241 = scalar_lea.sflag [#allocation9], %s240
          %s242 = sand.u32 %s110, 1
          %s243 = smul.addr %s242, 256
          %s244 = scalar_lea.vmem [#allocation8], %s243
          %s245 = smul.u32 4, %s22
          %s247 = ssub.s32 4096, 4096
          %248 = vsyncadd %s241, %s247
          %s249 = smul.addr %s245, 8
          %s250 = smul.addr %s249, 128
          %s251 = scalar_lea.hbm %s3, %s250
          %s252 = sshll.u32 %s244, 4
          %s253 = int_to_ptr.vmem [resolvable:$true] %s252
          %258 = dma.hbm_to_vmem [thread:$0]  %s251, 4096, %s253, %s241, 128, 128, 8
        $region32: #{tpu_custom_call.1} parent=15 // pred_fallthru
          _
      $region16: #{tpu_custom_call.1} parent=5 // pred_fallthru
        _
      %p259 = scmp.le.s32.totalorder 1, %s22
      %p260 = scmp.lt.s32.totalorder %s22, 3
      %p261 = pnand %p259, %p260
      %p262 = pneg %p261
      // Predicated region
      $region33: #{tpu_custom_call.1} parent=5 // pred_check
        _
      $region34: #{tpu_custom_call.1} parent=5 // pred_check_branch
        %264 = sbr.rel (%p261) target = $region36
      $region35: #{tpu_custom_call.1} parent=5 // pred_region
        %s265 = ssub.s32 %s22, 1
        %s266 = sand.u32 %s35, 1
        %s267 = scalar_lea.sflag [#allocation3], %s266
        %s268 = sand.u32 %s35, 1
        %s269 = smul.addr %s268, 256
        %s270 = scalar_lea.vmem [#allocation2], %s269
        // Predicated region
        $region37: #{tpu_custom_call.1} parent=35 // pred_check
          %p271 = pneg %p48
        $region38: #{tpu_custom_call.1} parent=35 // pred_check_branch
          %273 = sbr.rel (%p271) target = $region40
        $region39: #{tpu_custom_call.1} parent=35 // pred_region
          %274 = dma.done %s267, 4096
        $region40: #{tpu_custom_call.1} parent=35 // pred_fallthru
          _
        %s275 = sand.u32 %s27, 1
        %s276 = scalar_lea.sflag [#allocation6], %s275
        %s277 = sand.u32 %s61, 1
        %s278 = smul.addr %s277, 256
        %s279 = scalar_lea.vmem [#allocation5], %s278
        // Predicated region
        $region41: #{tpu_custom_call.1} parent=35 // pred_check
          %p280 = pneg %p74
        $region42: #{tpu_custom_call.1} parent=35 // pred_check_branch
          %282 = sbr.rel (%p280) target = $region44
        $region43: #{tpu_custom_call.1} parent=35 // pred_region
          %283 = dma.done %s276, 4096
        $region44: #{tpu_custom_call.1} parent=35 // pred_fallthru
          _
        %s284 = sand.u32 %s27, 1
        %s285 = scalar_lea.sflag [#allocation6], %s284
        %s286 = sand.u32 %s87, 1
        %s287 = smul.addr %s286, 256
        %s288 = scalar_lea.vmem [#allocation7], %s287
        // Predicated region
        $region45: #{tpu_custom_call.1} parent=35 // pred_check
          %p289 = pneg %p100
        $region46: #{tpu_custom_call.1} parent=35 // pred_check_branch
          %291 = sbr.rel (%p289) target = $region48
        $region47: #{tpu_custom_call.1} parent=35 // pred_region
          %292 = dma.done %s285, 4096
        $region48: #{tpu_custom_call.1} parent=35 // pred_fallthru
          _
        %s293 = sand.u32 %s113, 1
        %s294 = scalar_lea.sflag [#allocation9], %s293
        %s295 = sand.u32 %s113, 1
        %s296 = smul.addr %s295, 256
        %s297 = scalar_lea.vmem [#allocation8], %s296
        // Predicated region
        $region49: #{tpu_custom_call.1} parent=35 // pred_check
          %p298 = pneg %p126
        $region50: #{tpu_custom_call.1} parent=35 // pred_check_branch
          %300 = sbr.rel (%p298) target = $region52
        $region51: #{tpu_custom_call.1} parent=35 // pred_region
          %301 = dma.done %s294, 4096
        $region52: #{tpu_custom_call.1} parent=35 // pred_fallthru
          _
        %s302 = sand.u32 %s35, 1
        %s303 = scalar_lea.sflag [#allocation3], %s302
        %s304 = sand.u32 %s35, 1
        %s305 = smul.addr %s304, 256
        %s306 = scalar_lea.vmem [#allocation2], %s305
        %p307 = pneg %p48
        %p308 = pneg %p45
        %s309 = sand.u32 %s27, 1
        %s310 = scalar_lea.sflag [#allocation6], %s309
        %s311 = sand.u32 %s61, 1
        %s312 = smul.addr %s311, 256
        %s313 = scalar_lea.vmem [#allocation5], %s312
        %p314 = pneg %p74
        %p315 = pneg %p71
        %s316 = sand.u32 %s27, 1
        %s317 = scalar_lea.sflag [#allocation6], %s316
        %s318 = sand.u32 %s87, 1
        %s319 = smul.addr %s318, 256
        %s320 = scalar_lea.vmem [#allocation7], %s319
        %p321 = pneg %p100
        %p322 = pneg %p97
        %s323 = sand.u32 %s113, 1
        %s324 = scalar_lea.sflag [#allocation9], %s323
        %s325 = sand.u32 %s113, 1
        %s326 = smul.addr %s325, 256
        %s327 = scalar_lea.vmem [#allocation8], %s326
        %p328 = pneg %p126
        %p329 = pneg %p123
        %p330 = pneg %p152
        %p331 = pneg %p149
        %s332 = sand.u32 %s139, 1
        %s333 = scalar_lea.sflag [#allocation4], %s332
        %s334 = sand.u32 %s139, 1
        %s335 = smul.addr %s334, 256
        %s336 = scalar_lea.vmem [#allocation10], %s335
        %s337 = smul.u32 4, %s27
        %s338 = smul.u32 4, %s27
        %s339 = smul.u32 4, %s27
        %s340 = smul.u32 4, %s27
        %s341 = smul.u32 4, %s27
        %v342 = vld [vmem:[%s270] sm:$0xff]
        %v343 = vld [vmem:[%s270 + $0x8] sm:$0xff]
        %v344 = vld [vmem:[%s270 + $0x10] sm:$0xff]
        %v345 = vld [vmem:[%s270 + $0x18] sm:$0xff]
        %v346 = vld [vmem:[%s270 + $0x20] sm:$0xff]
        %v347 = vld [vmem:[%s270 + $0x28] sm:$0xff]
        %v348 = vld [vmem:[%s270 + $0x30] sm:$0xff]
        %v349 = vld [vmem:[%s270 + $0x38] sm:$0xff]
        %v350 = vld [vmem:[%s270 + $0x40] sm:$0xff]
        %v351 = vld [vmem:[%s270 + $0x48] sm:$0xff]
        %v352 = vld [vmem:[%s270 + $0x50] sm:$0xff]
        %v353 = vld [vmem:[%s270 + $0x58] sm:$0xff]
        %v354 = vld [vmem:[%s270 + $0x60] sm:$0xff]
        %v355 = vld [vmem:[%s270 + $0x68] sm:$0xff]
        %v356 = vld [vmem:[%s270 + $0x70] sm:$0xff]
        %v357 = vld [vmem:[%s270 + $0x78] sm:$0xff]
        %v358 = vld [vmem:[%s270 + $0x80] sm:$0xff]
        %v359 = vld [vmem:[%s270 + $0x88] sm:$0xff]
        %v360 = vld [vmem:[%s270 + $0x90] sm:$0xff]
        %v361 = vld [vmem:[%s270 + $0x98] sm:$0xff]
        %v362 = vld [vmem:[%s270 + $0xa0] sm:$0xff]
        %v363 = vld [vmem:[%s270 + $0xa8] sm:$0xff]
        %v364 = vld [vmem:[%s270 + $0xb0] sm:$0xff]
        %v365 = vld [vmem:[%s270 + $0xb8] sm:$0xff]
        %v366 = vld [vmem:[%s270 + $0xc0] sm:$0xff]
        %v367 = vld [vmem:[%s270 + $0xc8] sm:$0xff]
        %v368 = vld [vmem:[%s270 + $0xd0] sm:$0xff]
        %v369 = vld [vmem:[%s270 + $0xd8] sm:$0xff]
        %v370 = vld [vmem:[%s270 + $0xe0] sm:$0xff]
        %v371 = vld [vmem:[%s270 + $0xe8] sm:$0xff]
        %v372 = vld [vmem:[%s270 + $0xf0] sm:$0xff]
        %v373 = vld [vmem:[%s270 + $0xf8] sm:$0xff]
        %v374 = vmul.f32 %v342, 0.125
        %v375 = vmul.f32 %v343, 0.125
        %v376 = vmul.f32 %v344, 0.125
        %v377 = vmul.f32 %v345, 0.125
        %v378 = vmul.f32 %v346, 0.125
        %v379 = vmul.f32 %v347, 0.125
        %v380 = vmul.f32 %v348, 0.125
        %v381 = vmul.f32 %v349, 0.125
        %v382 = vmul.f32 %v350, 0.125
        %v383 = vmul.f32 %v351, 0.125
        %v384 = vmul.f32 %v352, 0.125
        %v385 = vmul.f32 %v353, 0.125
        %v386 = vmul.f32 %v354, 0.125
        %v387 = vmul.f32 %v355, 0.125
        %v388 = vmul.f32 %v356, 0.125
        %v389 = vmul.f32 %v357, 0.125
        %v390 = vmul.f32 %v358, 0.125
        %v391 = vmul.f32 %v359, 0.125
        %v392 = vmul.f32 %v360, 0.125
        %v393 = vmul.f32 %v361, 0.125
        %v394 = vmul.f32 %v362, 0.125
        %v395 = vmul.f32 %v363, 0.125
        %v396 = vmul.f32 %v364, 0.125
        %v397 = vmul.f32 %v365, 0.125
        %v398 = vmul.f32 %v366, 0.125
        %v399 = vmul.f32 %v367, 0.125
        %v400 = vmul.f32 %v368, 0.125
        %v401 = vmul.f32 %v369, 0.125
        %v402 = vmul.f32 %v370, 0.125
        %v403 = vmul.f32 %v371, 0.125
        %v404 = vmul.f32 %v372, 0.125
        %v405 = vmul.f32 %v373, 0.125
        %v406 = vld [vmem:[%s279] sm:$0xff]
        %v407 = vld [vmem:[%s279 + $0x8] sm:$0xff]
        %v408 = vld [vmem:[%s279 + $0x10] sm:$0xff]
        %v409 = vld [vmem:[%s279 + $0x18] sm:$0xff]
        %v410 = vld [vmem:[%s279 + $0x20] sm:$0xff]
        %v411 = vld [vmem:[%s279 + $0x28] sm:$0xff]
        %v412 = vld [vmem:[%s279 + $0x30] sm:$0xff]
        %v413 = vld [vmem:[%s279 + $0x38] sm:$0xff]
        %v414 = vld [vmem:[%s279 + $0x40] sm:$0xff]
        %v415 = vld [vmem:[%s279 + $0x48] sm:$0xff]
        %v416 = vld [vmem:[%s279 + $0x50] sm:$0xff]
        %v417 = vld [vmem:[%s279 + $0x58] sm:$0xff]
        %v418 = vld [vmem:[%s279 + $0x60] sm:$0xff]
        %v419 = vld [vmem:[%s279 + $0x68] sm:$0xff]
        %v420 = vld [vmem:[%s279 + $0x70] sm:$0xff]
        %v421 = vld [vmem:[%s279 + $0x78] sm:$0xff]
        %v422 = vld [vmem:[%s279 + $0x80] sm:$0xff]
        %v423 = vld [vmem:[%s279 + $0x88] sm:$0xff]
        %v424 = vld [vmem:[%s279 + $0x90] sm:$0xff]
        %v425 = vld [vmem:[%s279 + $0x98] sm:$0xff]
        %v426 = vld [vmem:[%s279 + $0xa0] sm:$0xff]
        %v427 = vld [vmem:[%s279 + $0xa8] sm:$0xff]
        %v428 = vld [vmem:[%s279 + $0xb0] sm:$0xff]
        %v429 = vld [vmem:[%s279 + $0xb8] sm:$0xff]
        %v430 = vld [vmem:[%s279 + $0xc0] sm:$0xff]
        %v431 = vld [vmem:[%s279 + $0xc8] sm:$0xff]
        %v432 = vld [vmem:[%s279 + $0xd0] sm:$0xff]
        %v433 = vld [vmem:[%s279 + $0xd8] sm:$0xff]
        %v434 = vld [vmem:[%s279 + $0xe0] sm:$0xff]
        %v435 = vld [vmem:[%s279 + $0xe8] sm:$0xff]
        %v436 = vld [vmem:[%s279 + $0xf0] sm:$0xff]
        %v437 = vld [vmem:[%s279 + $0xf8] sm:$0xff]
        %v438 = vld [vmem:[%s288] sm:$0xff]
        %v439 = vld [vmem:[%s288 + $0x8] sm:$0xff]
        %v440 = vld [vmem:[%s288 + $0x10] sm:$0xff]
        %v441 = vld [vmem:[%s288 + $0x18] sm:$0xff]
        %v442 = vld [vmem:[%s288 + $0x20] sm:$0xff]
        %v443 = vld [vmem:[%s288 + $0x28] sm:$0xff]
        %v444 = vld [vmem:[%s288 + $0x30] sm:$0xff]
        %v445 = vld [vmem:[%s288 + $0x38] sm:$0xff]
        %v446 = vld [vmem:[%s288 + $0x40] sm:$0xff]
        %v447 = vld [vmem:[%s288 + $0x48] sm:$0xff]
        %v448 = vld [vmem:[%s288 + $0x50] sm:$0xff]
        %v449 = vld [vmem:[%s288 + $0x58] sm:$0xff]
        %v450 = vld [vmem:[%s288 + $0x60] sm:$0xff]
        %v451 = vld [vmem:[%s288 + $0x68] sm:$0xff]
        %v452 = vld [vmem:[%s288 + $0x70] sm:$0xff]
        %v453 = vld [vmem:[%s288 + $0x78] sm:$0xff]
        %v454 = vld [vmem:[%s288 + $0x80] sm:$0xff]
        %v455 = vld [vmem:[%s288 + $0x88] sm:$0xff]
        %v456 = vld [vmem:[%s288 + $0x90] sm:$0xff]
        %v457 = vld [vmem:[%s288 + $0x98] sm:$0xff]
        %v458 = vld [vmem:[%s288 + $0xa0] sm:$0xff]
        %v459 = vld [vmem:[%s288 + $0xa8] sm:$0xff]
        %v460 = vld [vmem:[%s288 + $0xb0] sm:$0xff]
        %v461 = vld [vmem:[%s288 + $0xb8] sm:$0xff]
        %v462 = vld [vmem:[%s288 + $0xc0] sm:$0xff]
        %v463 = vld [vmem:[%s288 + $0xc8] sm:$0xff]
        %v464 = vld [vmem:[%s288 + $0xd0] sm:$0xff]
        %v465 = vld [vmem:[%s288 + $0xd8] sm:$0xff]
        %v466 = vld [vmem:[%s288 + $0xe0] sm:$0xff]
        %v467 = vld [vmem:[%s288 + $0xe8] sm:$0xff]
        %v468 = vld [vmem:[%s288 + $0xf0] sm:$0xff]
        %v469 = vld [vmem:[%s288 + $0xf8] sm:$0xff]
        %vm470 = vcmask 523264
        %v472 = vsel %vm470, %v374, 0
        %v475 = vsel %vm470, %v375, 0
        %v478 = vsel %vm470, %v376, 0
        %v481 = vsel %vm470, %v377, 0
        %v484 = vsel %vm470, %v378, 0
        %v487 = vsel %vm470, %v379, 0
        %v490 = vsel %vm470, %v380, 0
        %v493 = vsel %vm470, %v381, 0
        %v496 = vsel %vm470, %v406, 0
        %v499 = vsel %vm470, %v407, 0
        %v502 = vsel %vm470, %v408, 0
        %v505 = vsel %vm470, %v409, 0
        %v508 = vsel %vm470, %v410, 0
        %v511 = vsel %vm470, %v411, 0
        %v514 = vsel %vm470, %v412, 0
        %v517 = vsel %vm470, %v413, 0
        %519 = vmatprep.subr.mxu0 0.0
        %520 = vmatpush1.xpose.msra.mxu0 %v496
        %521 = vmatprep.subr.mxu0 0.0
        %522 = vmatpush1.xpose.msra.mxu0 %v499
        %523 = vmatprep.subr.mxu0 0.0
        %524 = vmatpush1.xpose.msra.mxu0 %v502
        %525 = vmatprep.subr.mxu0 0.0
        %526 = vmatpush1.xpose.msra.mxu0 %v505
        %527 = vmatprep.subr.mxu0 0.0
        %528 = vmatpush1.xpose.msra.mxu0 %v508
        %529 = vmatprep.subr.mxu0 0.0
        %530 = vmatpush1.xpose.msra.mxu0 %v511
        %531 = vmatprep.subr.mxu0 0.0
        %532 = vmatpush1.xpose.msra.mxu0 %v514
        %533 = vmatprep.subr.mxu0 0.0
        %534 = vmatpush1.xpose.msra.mxu0 %v517
        %535 = vmatprep.subr.mxu0 0.0
        %536 = vmatpush1.xpose.msra.mxu0 0.0
        %537 = vmatprep.subr.mxu0 0.0
        %538 = vmatpush1.xpose.msra.mxu0 0.0
        %539 = vmatprep.subr.mxu0 0.0
        %540 = vmatpush1.xpose.msra.mxu0 0.0
        %541 = vmatprep.subr.mxu0 0.0
        %542 = vmatpush1.xpose.msra.mxu0 0.0
        %543 = vmatprep.subr.mxu0 0.0
        %544 = vmatpush1.xpose.msra.mxu0 0.0
        %545 = vmatprep.subr.mxu0 0.0
        %546 = vmatpush1.xpose.msra.mxu0 0.0
        %547 = vmatprep.subr.mxu0 0.0
        %548 = vmatpush1.xpose.msra.mxu0 0.0
        %549 = vmatprep.subr.mxu0 0.0
        %550 = vmatpush1.xpose.msra.mxu0 0.0
        %551 = vmatprep.subr.mxu0 0.0
        %552 = vmatpush1.xpose.msra.mxu0 0.0
        %553 = vmatprep.subr.mxu0 0.0
        %554 = vmatpush1.xpose.msra.mxu0 0.0
        %555 = vmatprep.subr.mxu0 0.0
        %556 = vmatpush1.xpose.msra.mxu0 0.0
        %557 = vmatprep.subr.mxu0 0.0
        %558 = vmatpush1.xpose.msra.mxu0 0.0
        %559 = vmatprep.subr.mxu0 0.0
        %560 = vmatpush1.xpose.msra.mxu0 0.0
        %561 = vmatprep.subr.mxu0 0.0
        %562 = vmatpush1.xpose.msra.mxu0 0.0
        %563 = vmatprep.subr.mxu0 0.0
        %564 = vmatpush1.xpose.msra.mxu0 0.0
        %565 = vmatprep.subr.mxu0 0.0
        %566 = vmatpush1.xpose.msra.mxu0 0.0
        %567 = vmatprep.subr.mxu0 0.0
        %568 = vmatpush1.xpose.msra.mxu0 0.0
        %569 = vmatprep.subr.mxu0 0.0
        %570 = vmatpush1.xpose.msra.mxu0 0.0
        %571 = vmatprep.subr.mxu0 0.0
        %572 = vmatpush1.xpose.msra.mxu0 0.0
        %573 = vmatprep.subr.mxu0 0.0
        %574 = vmatpush1.xpose.msra.mxu0 0.0
        %575 = vmatprep.subr.mxu0 0.0
        %576 = vmatpush1.xpose.msra.mxu0 0.0
        %577 = vmatprep.subr.mxu0 0.0
        %578 = vmatpush1.xpose.msra.mxu0 0.0
        %579 = vmatprep.subr.mxu0 0.0
        %580 = vmatpush1.xpose.msra.mxu0 0.0
        %581 = vmatprep.subr.mxu0 0.0
        %582 = vmatpush1.xpose.msra.mxu0 0.0
        %583 = vmatprep.mubr.f32.mxu0 0.0
        %584 = vmatmul.mubr.f32.gmra.mrb[0].mxu0 %v472
        %v585 = vpop.f32.mrb[0].mxu0
        %v586 = vadd.f32 0.0, %v585
        %v587 = vpop.f32.mrb[0].mxu0
        %588 = vmatprep.mubr.f32.mxu0 0.0
        %589 = vmatmul.mubr.f32.gmra.mrb[0].mxu0 %v475
        %v590 = vpop.f32.mrb[0].mxu0
        %v591 = vadd.f32 0.0, %v590
        %v592 = vpop.f32.mrb[0].mxu0
        %593 = vmatprep.mubr.f32.mxu0 0.0
        %594 = vmatmul.mubr.f32.gmra.mrb[0].mxu0 %v478
        %v595 = vpop.f32.mrb[0].mxu0
        %v596 = vadd.f32 0.0, %v595
        %v597 = vpop.f32.mrb[0].mxu0
        %598 = vmatprep.mubr.f32.mxu0 0.0
        %599 = vmatmul.mubr.f32.gmra.mrb[0].mxu0 %v481
        %v600 = vpop.f32.mrb[0].mxu0
        %v601 = vadd.f32 0.0, %v600
        %v602 = vpop.f32.mrb[0].mxu0
        %603 = vmatprep.mubr.f32.mxu0 0.0
        %604 = vmatmul.mubr.f32.gmra.mrb[0].mxu0 %v484
        %v605 = vpop.f32.mrb[0].mxu0
        %v606 = vadd.f32 0.0, %v605
        %v607 = vpop.f32.mrb[0].mxu0
        %608 = vmatprep.mubr.f32.mxu0 0.0
        %609 = vmatmul.mubr.f32.gmra.mrb[0].mxu0 %v487
        %v610 = vpop.f32.mrb[0].mxu0
        %v611 = vadd.f32 0.0, %v610
        %v612 = vpop.f32.mrb[0].mxu0
        %613 = vmatprep.mubr.f32.mxu0 0.0
        %614 = vmatmul.mubr.f32.gmra.mrb[0].mxu0 %v490
        %v615 = vpop.f32.mrb[0].mxu0
        %v616 = vadd.f32 0.0, %v615
        %v617 = vpop.f32.mrb[0].mxu0
        %618 = vmatprep.mubr.f32.mxu0 0.0
        %619 = vmatmul.mubr.f32.gmra.mrb[0].mxu0 %v493
        %v620 = vpop.f32.mrb[0].mxu0
        %v621 = vadd.f32 0.0, %v620
        %v622 = vpop.f32.mrb[0].mxu0
        %623 = vdwg.mxu0
        %v625 = vsel %vm470, %v382, 0
        %v628 = vsel %vm470, %v383, 0
        %v631 = vsel %vm470, %v384, 0
        %v634 = vsel %vm470, %v385, 0
        %v637 = vsel %vm470, %v386, 0
        %v640 = vsel %vm470, %v387, 0
        %v643 = vsel %vm470, %v388, 0
        %v646 = vsel %vm470, %v389, 0
        %v649 = vsel %vm470, %v414, 0
        %v652 = vsel %vm470, %v415, 0
        %v655 = vsel %vm470, %v416, 0
        %v658 = vsel %vm470, %v417, 0
        %v661 = vsel %vm470, %v418, 0
        %v664 = vsel %vm470, %v419, 0
        %v667 = vsel %vm470, %v420, 0
        %v670 = vsel %vm470, %v421, 0
        %672 = vmatprep.subr.mxu0 0.0
        %673 = vmatpush1.xpose.msra.mxu0 %v649
        %674 = vmatprep.subr.mxu0 0.0
        %675 = vmatpush1.xpose.msra.mxu0 %v652
        %676 = vmatprep.subr.mxu0 0.0
        %677 = vmatpush1.xpose.msra.mxu0 %v655
        %678 = vmatprep.subr.mxu0 0.0
        %679 = vmatpush1.xpose.msra.mxu0 %v658
        %680 = vmatprep.subr.mxu0 0.0
        %681 = vmatpush1.xpose.msra.mxu0 %v661
        %682 = vmatprep.subr.mxu0 0.0
        %683 = vmatpush1.xpose.msra.mxu0 %v664
        %684 = vmatprep.subr.mxu0 0.0
        %685 = vmatpush1.xpose.msra.mxu0 %v667
        %686 = vmatprep.subr.mxu0 0.0
        %687 = vmatpush1.xpose.msra.mxu0 %v670
        %688 = vmatprep.subr.mxu0 0.0
        %689 = vmatpush1.xpose.msra.mxu0 0.0
        %690 = vmatprep.subr.mxu0 0.0
        %691 = vmatpush1.xpose.msra.mxu0 0.0
        %692 = vmatprep.subr.mxu0 0.0
        %693 = vmatpush1.xpose.msra.mxu0 0.0
        %694 = vmatprep.subr.mxu0 0.0
        %695 = vmatpush1.xpose.msra.mxu0 0.0
        %696 = vmatprep.subr.mxu0 0.0
        %697 = vmatpush1.xpose.msra.mxu0 0.0
        %698 = vmatprep.subr.mxu0 0.0
        %699 = vmatpush1.xpose.msra.mxu0 0.0
        %700 = vmatprep.subr.mxu0 0.0
        %701 = vmatpush1.xpose.msra.mxu0 0.0
        %702 = vmatprep.subr.mxu0 0.0
        %703 = vmatpush1.xpose.msra.mxu0 0.0
        %704 = vmatprep.subr.mxu0 0.0
        %705 = vmatpush1.xpose.msra.mxu0 0.0
        %706 = vmatprep.subr.mxu0 0.0
        %707 = vmatpush1.xpose.msra.mxu0 0.0
        %708 = vmatprep.subr.mxu0 0.0
        %709 = vmatpush1.xpose.msra.mxu0 0.0
        %710 = vmatprep.subr.mxu0 0.0
        %711 = vmatpush1.xpose.msra.mxu0 0.0
        %712 = vmatprep.subr.mxu0 0.0
        %713 = vmatpush1.xpose.msra.mxu0 0.0
        %714 = vmatprep.subr.mxu0 0.0
        %715 = vmatpush1.xpose.msra.mxu0 0.0
        %716 = vmatprep.subr.mxu0 0.0
        %717 = vmatpush1.xpose.msra.mxu0 0.0
        %718 = vmatprep.subr.mxu0 0.0
        %719 = vmatpush1.xpose.msra.mxu0 0.0
        %720 = vmatprep.subr.mxu0 0.0
        %721 = vmatpush1.xpose.msra.mxu0 0.0
        %722 = vmatprep.subr.mxu0 0.0
        %723 = vmatpush1.xpose.msra.mxu0 0.0
        %724 = vmatprep.subr.mxu0 0.0
        %725 = vmatpush1.xpose.msra.mxu0 0.0
        %726 = vmatprep.subr.mxu0 0.0
        %727 = vmatpush1.xpose.msra.mxu0 0.0
        %728 = vmatprep.subr.mxu0 0.0
        %729 = vmatpush1.xpose.msra.mxu0 0.0
        %730 = vmatprep.subr.mxu0 0.0
        %731 = vmatpush1.xpose.msra.mxu0 0.0
        %732 = vmatprep.subr.mxu0 0.0
        %733 = vmatpush1.xpose.msra.mxu0 0.0
        %734 = vmatprep.subr.mxu0 0.0
        %735 = vmatpush1.xpose.msra.mxu0 0.0
        %736 = vmatprep.mubr.f32.mxu0 0.0
        %737 = vmatmul.mubr.f32.gmra.mrb[0].mxu0 %v625
        %v738 = vpop.f32.mrb[0].mxu0
        %v739 = vadd.f32 0.0, %v738
        %v740 = vpop.f32.mrb[0].mxu0
        %741 = vmatprep.mubr.f32.mxu0 0.0
        %742 = vmatmul.mubr.f32.gmra.mrb[0].mxu0 %v628
        %v743 = vpop.f32.mrb[0].mxu0
        %v744 = vadd.f32 0.0, %v743
        %v745 = vpop.f32.mrb[0].mxu0
        %746 = vmatprep.mubr.f32.mxu0 0.0
        %747 = vmatmul.mubr.f32.gmra.mrb[0].mxu0 %v631
        %v748 = vpop.f32.mrb[0].mxu0
        %v749 = vadd.f32 0.0, %v748
        %v750 = vpop.f32.mrb[0].mxu0
        %751 = vmatprep.mubr.f32.mxu0 0.0
        %752 = vmatmul.mubr.f32.gmra.mrb[0].mxu0 %v634
        %v753 = vpop.f32.mrb[0].mxu0
        %v754 = vadd.f32 0.0, %v753
        %v755 = vpop.f32.mrb[0].mxu0
        %756 = vmatprep.mubr.f32.mxu0 0.0
        %757 = vmatmul.mubr.f32.gmra.mrb[0].mxu0 %v637
        %v758 = vpop.f32.mrb[0].mxu0
        %v759 = vadd.f32 0.0, %v758
        %v760 = vpop.f32.mrb[0].mxu0
        %761 = vmatprep.mubr.f32.mxu0 0.0
        %762 = vmatmul.mubr.f32.gmra.mrb[0].mxu0 %v640
        %v763 = vpop.f32.mrb[0].mxu0
        %v764 = vadd.f32 0.0, %v763
        %v765 = vpop.f32.mrb[0].mxu0
        %766 = vmatprep.mubr.f32.mxu0 0.0
        %767 = vmatmul.mubr.f32.gmra.mrb[0].mxu0 %v643
        %v768 = vpop.f32.mrb[0].mxu0
        %v769 = vadd.f32 0.0, %v768
        %v770 = vpop.f32.mrb[0].mxu0
        %771 = vmatprep.mubr.f32.mxu0 0.0
        %772 = vmatmul.mubr.f32.gmra.mrb[0].mxu0 %v646
        %v773 = vpop.f32.mrb[0].mxu0
        %v774 = vadd.f32 0.0, %v773
        %v775 = vpop.f32.mrb[0].mxu0
        %776 = vdwg.mxu0
        %v778 = vsel %vm470, %v390, 0
        %v781 = vsel %vm470, %v391, 0
        %v784 = vsel %vm470, %v392, 0
        %v787 = vsel %vm470, %v393, 0
        %v790 = vsel %vm470, %v394, 0
        %v793 = vsel %vm470, %v395, 0
        %v796 = vsel %vm470, %v396, 0
        %v799 = vsel %vm470, %v397, 0
        %v802 = vsel %vm470, %v422, 0
        %v805 = vsel %vm470, %v423, 0
        %v808 = vsel %vm470, %v424, 0
        %v811 = vsel %vm470, %v425, 0
        %v814 = vsel %vm470, %v426, 0
        %v817 = vsel %vm470, %v427, 0
        %v820 = vsel %vm470, %v428, 0
        %v823 = vsel %vm470, %v429, 0
        %825 = vmatprep.subr.mxu0 0.0
        %826 = vmatpush1.xpose.msra.mxu0 %v802
        %827 = vmatprep.subr.mxu0 0.0
        %828 = vmatpush1.xpose.msra.mxu0 %v805
        %829 = vmatprep.subr.mxu0 0.0
        %830 = vmatpush1.xpose.msra.mxu0 %v808
        %831 = vmatprep.subr.mxu0 0.0
        %832 = vmatpush1.xpose.msra.mxu0 %v811
        %833 = vmatprep.subr.mxu0 0.0
        %834 = vmatpush1.xpose.msra.mxu0 %v814
        %835 = vmatprep.subr.mxu0 0.0
        %836 = vmatpush1.xpose.msra.mxu0 %v817
        %837 = vmatprep.subr.mxu0 0.0
        %838 = vmatpush1.xpose.msra.mxu0 %v820
        %839 = vmatprep.subr.mxu0 0.0
        %840 = vmatpush1.xpose.msra.mxu0 %v823
        %841 = vmatprep.subr.mxu0 0.0
        %842 = vmatpush1.xpose.msra.mxu0 0.0
        %843 = vmatprep.subr.mxu0 0.0
        %844 = vmatpush1.xpose.msra.mxu0 0.0
        %845 = vmatprep.subr.mxu0 0.0
        %846 = vmatpush1.xpose.msra.mxu0 0.0
        %847 = vmatprep.subr.mxu0 0.0
        %848 = vmatpush1.xpose.msra.mxu0 0.0
        %849 = vmatprep.subr.mxu0 0.0
        %850 = vmatpush1.xpose.msra.mxu0 0.0
        %851 = vmatprep.subr.mxu0 0.0
        %852 = vmatpush1.xpose.msra.mxu0 0.0
        %853 = vmatprep.subr.mxu0 0.0
        %854 = vmatpush1.xpose.msra.mxu0 0.0
        %855 = vmatprep.subr.mxu0 0.0
        %856 = vmatpush1.xpose.msra.mxu0 0.0
        %857 = vmatprep.subr.mxu0 0.0
        %858 = vmatpush1.xpose.msra.mxu0 0.0
        %859 = vmatprep.subr.mxu0 0.0
        %860 = vmatpush1.xpose.msra.mxu0 0.0
        %861 = vmatprep.subr.mxu0 0.0
        %862 = vmatpush1.xpose.msra.mxu0 0.0
        %863 = vmatprep.subr.mxu0 0.0
        %864 = vmatpush1.xpose.msra.mxu0 0.0
        %865 = vmatprep.subr.mxu0 0.0
        %866 = vmatpush1.xpose.msra.mxu0 0.0
        %867 = vmatprep.subr.mxu0 0.0
        %868 = vmatpush1.xpose.msra.mxu0 0.0
        %869 = vmatprep.subr.mxu0 0.0
        %870 = vmatpush1.xpose.msra.mxu0 0.0
        %871 = vmatprep.subr.mxu0 0.0
        %872 = vmatpush1.xpose.msra.mxu0 0.0
        %873 = vmatprep.subr.mxu0 0.0
        %874 = vmatpush1.xpose.msra.mxu0 0.0
        %875 = vmatprep.subr.mxu0 0.0
        %876 = vmatpush1.xpose.msra.mxu0 0.0
        %877 = vmatprep.subr.mxu0 0.0
        %878 = vmatpush1.xpose.msra.mxu0 0.0
        %879 = vmatprep.subr.mxu0 0.0
        %880 = vmatpush1.xpose.msra.mxu0 0.0
        %881 = vmatprep.subr.mxu0 0.0
        %882 = vmatpush1.xpose.msra.mxu0 0.0
        %883 = vmatprep.subr.mxu0 0.0
        %884 = vmatpush1.xpose.msra.mxu0 0.0
        %885 = vmatprep.subr.mxu0 0.0
        %886 = vmatpush1.xpose.msra.mxu0 0.0
        %887 = vmatprep.subr.mxu0 0.0
        %888 = vmatpush1.xpose.msra.mxu0 0.0
        %889 = vmatprep.mubr.f32.mxu0 0.0
        %890 = vmatmul.mubr.f32.gmra.mrb[0].mxu0 %v778
        %v891 = vpop.f32.mrb[0].mxu0
        %v892 = vadd.f32 0.0, %v891
        %v893 = vpop.f32.mrb[0].mxu0
        %894 = vmatprep.mubr.f32.mxu0 0.0
        %895 = vmatmul.mubr.f32.gmra.mrb[0].mxu0 %v781
        %v896 = vpop.f32.mrb[0].mxu0
        %v897 = vadd.f32 0.0, %v896
        %v898 = vpop.f32.mrb[0].mxu0
        %899 = vmatprep.mubr.f32.mxu0 0.0
        %900 = vmatmul.mubr.f32.gmra.mrb[0].mxu0 %v784
        %v901 = vpop.f32.mrb[0].mxu0
        %v902 = vadd.f32 0.0, %v901
        %v903 = vpop.f32.mrb[0].mxu0
        %904 = vmatprep.mubr.f32.mxu0 0.0
        %905 = vmatmul.mubr.f32.gmra.mrb[0].mxu0 %v787
        %v906 = vpop.f32.mrb[0].mxu0
        %v907 = vadd.f32 0.0, %v906
        %v908 = vpop.f32.mrb[0].mxu0
        %909 = vmatprep.mubr.f32.mxu0 0.0
        %910 = vmatmul.mubr.f32.gmra.mrb[0].mxu0 %v790
        %v911 = vpop.f32.mrb[0].mxu0
        %v912 = vadd.f32 0.0, %v911
        %v913 = vpop.f32.mrb[0].mxu0
        %914 = vmatprep.mubr.f32.mxu0 0.0
        %915 = vmatmul.mubr.f32.gmra.mrb[0].mxu0 %v793
        %v916 = vpop.f32.mrb[0].mxu0
        %v917 = vadd.f32 0.0, %v916
        %v918 = vpop.f32.mrb[0].mxu0
        %919 = vmatprep.mubr.f32.mxu0 0.0
        %920 = vmatmul.mubr.f32.gmra.mrb[0].mxu0 %v796
        %v921 = vpop.f32.mrb[0].mxu0
        %v922 = vadd.f32 0.0, %v921
        %v923 = vpop.f32.mrb[0].mxu0
        %924 = vmatprep.mubr.f32.mxu0 0.0
        %925 = vmatmul.mubr.f32.gmra.mrb[0].mxu0 %v799
        %v926 = vpop.f32.mrb[0].mxu0
        %v927 = vadd.f32 0.0, %v926
        %v928 = vpop.f32.mrb[0].mxu0
        %929 = vdwg.mxu0
        %v931 = vsel %vm470, %v398, 0
        %v934 = vsel %vm470, %v399, 0
        %v937 = vsel %vm470, %v400, 0
        %v940 = vsel %vm470, %v401, 0
        %v943 = vsel %vm470, %v402, 0
        %v946 = vsel %vm470, %v403, 0
        %v949 = vsel %vm470, %v404, 0
        %v952 = vsel %vm470, %v405, 0
        %v955 = vsel %vm470, %v430, 0
        %v958 = vsel %vm470, %v431, 0
        %v961 = vsel %vm470, %v432, 0
        %v964 = vsel %vm470, %v433, 0
        %v967 = vsel %vm470, %v434, 0
        %v970 = vsel %vm470, %v435, 0
        %v973 = vsel %vm470, %v436, 0
        %v976 = vsel %vm470, %v437, 0
        %978 = vmatprep.subr.mxu0 0.0
        %979 = vmatpush1.xpose.msra.mxu0 %v955
        %980 = vmatprep.subr.mxu0 0.0
        %981 = vmatpush1.xpose.msra.mxu0 %v958
        %982 = vmatprep.subr.mxu0 0.0
        %983 = vmatpush1.xpose.msra.mxu0 %v961
        %984 = vmatprep.subr.mxu0 0.0
        %985 = vmatpush1.xpose.msra.mxu0 %v964
        %986 = vmatprep.subr.mxu0 0.0
        %987 = vmatpush1.xpose.msra.mxu0 %v967
        %988 = vmatprep.subr.mxu0 0.0
        %989 = vmatpush1.xpose.msra.mxu0 %v970
        %990 = vmatprep.subr.mxu0 0.0
        %991 = vmatpush1.xpose.msra.mxu0 %v973
        %992 = vmatprep.subr.mxu0 0.0
        %993 = vmatpush1.xpose.msra.mxu0 %v976
        %994 = vmatprep.subr.mxu0 0.0
        %995 = vmatpush1.xpose.msra.mxu0 0.0
        %996 = vmatprep.subr.mxu0 0.0
        %997 = vmatpush1.xpose.msra.mxu0 0.0
        %998 = vmatprep.subr.mxu0 0.0
        %999 = vmatpush1.xpose.msra.mxu0 0.0
        %1000 = vmatprep.subr.mxu0 0.0
        %1001 = vmatpush1.xpose.msra.mxu0 0.0
        %1002 = vmatprep.subr.mxu0 0.0
        %1003 = vmatpush1.xpose.msra.mxu0 0.0
        %1004 = vmatprep.subr.mxu0 0.0
        %1005 = vmatpush1.xpose.msra.mxu0 0.0
        %1006 = vmatprep.subr.mxu0 0.0
        %1007 = vmatpush1.xpose.msra.mxu0 0.0
        %1008 = vmatprep.subr.mxu0 0.0
        %1009 = vmatpush1.xpose.msra.mxu0 0.0
        %1010 = vmatprep.subr.mxu0 0.0
        %1011 = vmatpush1.xpose.msra.mxu0 0.0
        %1012 = vmatprep.subr.mxu0 0.0
        %1013 = vmatpush1.xpose.msra.mxu0 0.0
        %1014 = vmatprep.subr.mxu0 0.0
        %1015 = vmatpush1.xpose.msra.mxu0 0.0
        %1016 = vmatprep.subr.mxu0 0.0
        %1017 = vmatpush1.xpose.msra.mxu0 0.0
        %1018 = vmatprep.subr.mxu0 0.0
        %1019 = vmatpush1.xpose.msra.mxu0 0.0
        %1020 = vmatprep.subr.mxu0 0.0
        %1021 = vmatpush1.xpose.msra.mxu0 0.0
        %1022 = vmatprep.subr.mxu0 0.0
        %1023 = vmatpush1.xpose.msra.mxu0 0.0
        %1024 = vmatprep.subr.mxu0 0.0
        %1025 = vmatpush1.xpose.msra.mxu0 0.0
        %1026 = vmatprep.subr.mxu0 0.0
        %1027 = vmatpush1.xpose.msra.mxu0 0.0
        %1028 = vmatprep.subr.mxu0 0.0
        %1029 = vmatpush1.xpose.msra.mxu0 0.0
        %1030 = vmatprep.subr.mxu0 0.0
        %1031 = vmatpush1.xpose.msra.mxu0 0.0
        %1032 = vmatprep.subr.mxu0 0.0
        %1033 = vmatpush1.xpose.msra.mxu0 0.0
        %1034 = vmatprep.subr.mxu0 0.0
        %1035 = vmatpush1.xpose.msra.mxu0 0.0
        %1036 = vmatprep.subr.mxu0 0.0
        %1037 = vmatpush1.xpose.msra.mxu0 0.0
        %1038 = vmatprep.subr.mxu0 0.0
        %1039 = vmatpush1.xpose.msra.mxu0 0.0
        %1040 = vmatprep.subr.mxu0 0.0
        %1041 = vmatpush1.xpose.msra.mxu0 0.0
        %1042 = vmatprep.mubr.f32.mxu0 0.0
        %1043 = vmatmul.mubr.f32.gmra.mrb[0].mxu0 %v931
        %v1044 = vpop.f32.mrb[0].mxu0
        %v1045 = vadd.f32 0.0, %v1044
        %v1046 = vpop.f32.mrb[0].mxu0
        %1047 = vmatprep.mubr.f32.mxu0 0.0
        %1048 = vmatmul.mubr.f32.gmra.mrb[0].mxu0 %v934
        %v1049 = vpop.f32.mrb[0].mxu0
        %v1050 = vadd.f32 0.0, %v1049
        %v1051 = vpop.f32.mrb[0].mxu0
        %1052 = vmatprep.mubr.f32.mxu0 0.0
        %1053 = vmatmul.mubr.f32.gmra.mrb[0].mxu0 %v937
        %v1054 = vpop.f32.mrb[0].mxu0
        %v1055 = vadd.f32 0.0, %v1054
        %v1056 = vpop.f32.mrb[0].mxu0
        %1057 = vmatprep.mubr.f32.mxu0 0.0
        %1058 = vmatmul.mubr.f32.gmra.mrb[0].mxu0 %v940
        %v1059 = vpop.f32.mrb[0].mxu0
        %v1060 = vadd.f32 0.0, %v1059
        %v1061 = vpop.f32.mrb[0].mxu0
        %1062 = vmatprep.mubr.f32.mxu0 0.0
        %1063 = vmatmul.mubr.f32.gmra.mrb[0].mxu0 %v943
        %v1064 = vpop.f32.mrb[0].mxu0
        %v1065 = vadd.f32 0.0, %v1064
        %v1066 = vpop.f32.mrb[0].mxu0
        %1067 = vmatprep.mubr.f32.mxu0 0.0
        %1068 = vmatmul.mubr.f32.gmra.mrb[0].mxu0 %v946
        %v1069 = vpop.f32.mrb[0].mxu0
        %v1070 = vadd.f32 0.0, %v1069
        %v1071 = vpop.f32.mrb[0].mxu0
        %1072 = vmatprep.mubr.f32.mxu0 0.0
        %1073 = vmatmul.mubr.f32.gmra.mrb[0].mxu0 %v949
        %v1074 = vpop.f32.mrb[0].mxu0
        %v1075 = vadd.f32 0.0, %v1074
        %v1076 = vpop.f32.mrb[0].mxu0
        %1077 = vmatprep.mubr.f32.mxu0 0.0
        %1078 = vmatmul.mubr.f32.gmra.mrb[0].mxu0 %v952
        %v1079 = vpop.f32.mrb[0].mxu0
        %v1080 = vadd.f32 0.0, %v1079
        %v1081 = vpop.f32.mrb[0].mxu0
        %1082 = vdwg.mxu0
        %v1083 = vsel %vm470, %v586, -inf
        %1084 = vmax.xlane.f32.xlu0 %v1083
        %v1085 = vpop.xlane.xlu0 %1084
        %v1086 = vsel %vm470, %v591, -inf
        %1087 = vmax.xlane.f32.xlu0 %v1086
        %v1088 = vpop.xlane.xlu0 %1087
        %v1089 = vsel %vm470, %v596, -inf
        %1090 = vmax.xlane.f32.xlu0 %v1089
        %v1091 = vpop.xlane.xlu0 %1090
        %v1092 = vsel %vm470, %v601, -inf
        %1093 = vmax.xlane.f32.xlu0 %v1092
        %v1094 = vpop.xlane.xlu0 %1093
        %v1095 = vsel %vm470, %v606, -inf
        %1096 = vmax.xlane.f32.xlu0 %v1095
        %v1097 = vpop.xlane.xlu0 %1096
        %v1098 = vsel %vm470, %v611, -inf
        %1099 = vmax.xlane.f32.xlu0 %v1098
        %v1100 = vpop.xlane.xlu0 %1099
        %v1101 = vsel %vm470, %v616, -inf
        %1102 = vmax.xlane.f32.xlu0 %v1101
        %v1103 = vpop.xlane.xlu0 %1102
        %v1104 = vsel %vm470, %v621, -inf
        %1105 = vmax.xlane.f32.xlu0 %v1104
        %v1106 = vpop.xlane.xlu0 %1105
        %v1107 = vsel %vm470, %v739, -inf
        %1108 = vmax.xlane.f32.xlu0 %v1107
        %v1109 = vpop.xlane.xlu0 %1108
        %v1110 = vsel %vm470, %v744, -inf
        %1111 = vmax.xlane.f32.xlu0 %v1110
        %v1112 = vpop.xlane.xlu0 %1111
        %v1113 = vsel %vm470, %v749, -inf
        %1114 = vmax.xlane.f32.xlu0 %v1113
        %v1115 = vpop.xlane.xlu0 %1114
        %v1116 = vsel %vm470, %v754, -inf
        %1117 = vmax.xlane.f32.xlu0 %v1116
        %v1118 = vpop.xlane.xlu0 %1117
        %v1119 = vsel %vm470, %v759, -inf
        %1120 = vmax.xlane.f32.xlu0 %v1119
        %v1121 = vpop.xlane.xlu0 %1120
        %v1122 = vsel %vm470, %v764, -inf
        %1123 = vmax.xlane.f32.xlu0 %v1122
        %v1124 = vpop.xlane.xlu0 %1123
        %v1125 = vsel %vm470, %v769, -inf
        %1126 = vmax.xlane.f32.xlu0 %v1125
        %v1127 = vpop.xlane.xlu0 %1126
        %v1128 = vsel %vm470, %v774, -inf
        %1129 = vmax.xlane.f32.xlu0 %v1128
        %v1130 = vpop.xlane.xlu0 %1129
        %v1131 = vsel %vm470, %v892, -inf
        %1132 = vmax.xlane.f32.xlu0 %v1131
        %v1133 = vpop.xlane.xlu0 %1132
        %v1134 = vsel %vm470, %v897, -inf
        %1135 = vmax.xlane.f32.xlu0 %v1134
        %v1136 = vpop.xlane.xlu0 %1135
        %v1137 = vsel %vm470, %v902, -inf
        %1138 = vmax.xlane.f32.xlu0 %v1137
        %v1139 = vpop.xlane.xlu0 %1138
        %v1140 = vsel %vm470, %v907, -inf
        %1141 = vmax.xlane.f32.xlu0 %v1140
        %v1142 = vpop.xlane.xlu0 %1141
        %v1143 = vsel %vm470, %v912, -inf
        %1144 = vmax.xlane.f32.xlu0 %v1143
        %v1145 = vpop.xlane.xlu0 %1144
        %v1146 = vsel %vm470, %v917, -inf
        %1147 = vmax.xlane.f32.xlu0 %v1146
        %v1148 = vpop.xlane.xlu0 %1147
        %v1149 = vsel %vm470, %v922, -inf
        %1150 = vmax.xlane.f32.xlu0 %v1149
        %v1151 = vpop.xlane.xlu0 %1150
        %v1152 = vsel %vm470, %v927, -inf
        %1153 = vmax.xlane.f32.xlu0 %v1152
        %v1154 = vpop.xlane.xlu0 %1153
        %v1155 = vsel %vm470, %v1045, -inf
        %1156 = vmax.xlane.f32.xlu0 %v1155
        %v1157 = vpop.xlane.xlu0 %1156
        %v1158 = vsel %vm470, %v1050, -inf
        %1159 = vmax.xlane.f32.xlu0 %v1158
        %v1160 = vpop.xlane.xlu0 %1159
        %v1161 = vsel %vm470, %v1055, -inf
        %1162 = vmax.xlane.f32.xlu0 %v1161
        %v1163 = vpop.xlane.xlu0 %1162
        %v1164 = vsel %vm470, %v1060, -inf
        %1165 = vmax.xlane.f32.xlu0 %v1164
        %v1166 = vpop.xlane.xlu0 %1165
        %v1167 = vsel %vm470, %v1065, -inf
        %1168 = vmax.xlane.f32.xlu0 %v1167
        %v1169 = vpop.xlane.xlu0 %1168
        %v1170 = vsel %vm470, %v1070, -inf
        %1171 = vmax.xlane.f32.xlu0 %v1170
        %v1172 = vpop.xlane.xlu0 %1171
        %v1173 = vsel %vm470, %v1075, -inf
        %1174 = vmax.xlane.f32.xlu0 %v1173
        %v1175 = vpop.xlane.xlu0 %1174
        %v1176 = vsel %vm470, %v1080, -inf
        %1177 = vmax.xlane.f32.xlu0 %v1176
        %v1178 = vpop.xlane.xlu0 %1177
        %v1179 = vsub.f32 %v586, %v1085
        %v1180 = vsub.f32 %v591, %v1088
        %v1181 = vsub.f32 %v596, %v1091
        %v1182 = vsub.f32 %v601, %v1094
        %v1183 = vsub.f32 %v606, %v1097
        %v1184 = vsub.f32 %v611, %v1100
        %v1185 = vsub.f32 %v616, %v1103
        %v1186 = vsub.f32 %v621, %v1106
        %v1187 = vsub.f32 %v739, %v1109
        %v1188 = vsub.f32 %v744, %v1112
        %v1189 = vsub.f32 %v749, %v1115
        %v1190 = vsub.f32 %v754, %v1118
        %v1191 = vsub.f32 %v759, %v1121
        %v1192 = vsub.f32 %v764, %v1124
        %v1193 = vsub.f32 %v769, %v1127
        %v1194 = vsub.f32 %v774, %v1130
        %v1195 = vsub.f32 %v892, %v1133
        %v1196 = vsub.f32 %v897, %v1136
        %v1197 = vsub.f32 %v902, %v1139
        %v1198 = vsub.f32 %v907, %v1142
        %v1199 = vsub.f32 %v912, %v1145
        %v1200 = vsub.f32 %v917, %v1148
        %v1201 = vsub.f32 %v922, %v1151
        %v1202 = vsub.f32 %v927, %v1154
        %v1203 = vsub.f32 %v1045, %v1157
        %v1204 = vsub.f32 %v1050, %v1160
        %v1205 = vsub.f32 %v1055, %v1163
        %v1206 = vsub.f32 %v1060, %v1166
        %v1207 = vsub.f32 %v1065, %v1169
        %v1208 = vsub.f32 %v1070, %v1172
        %v1209 = vsub.f32 %v1075, %v1175
        %v1210 = vsub.f32 %v1080, %v1178
        %v1211 = vmul.f32 %v1179, 1.442695
        %v1212 = vpow.pop %v1211
        %v1213 = vmul.f32 %v1180, 1.442695
        %v1214 = vpow.pop %v1213
        %v1215 = vmul.f32 %v1181, 1.442695
        %v1216 = vpow.pop %v1215
        %v1217 = vmul.f32 %v1182, 1.442695
        %v1218 = vpow.pop %v1217
        %v1219 = vmul.f32 %v1183, 1.442695
        %v1220 = vpow.pop %v1219
        %v1221 = vmul.f32 %v1184, 1.442695
        %v1222 = vpow.pop %v1221
        %v1223 = vmul.f32 %v1185, 1.442695
        %v1224 = vpow.pop %v1223
        %v1225 = vmul.f32 %v1186, 1.442695
        %v1226 = vpow.pop %v1225
        %v1227 = vmul.f32 %v1187, 1.442695
        %v1228 = vpow.pop %v1227
        %v1229 = vmul.f32 %v1188, 1.442695
        %v1230 = vpow.pop %v1229
        %v1231 = vmul.f32 %v1189, 1.442695
        %v1232 = vpow.pop %v1231
        %v1233 = vmul.f32 %v1190, 1.442695
        %v1234 = vpow.pop %v1233
        %v1235 = vmul.f32 %v1191, 1.442695
        %v1236 = vpow.pop %v1235
        %v1237 = vmul.f32 %v1192, 1.442695
        %v1238 = vpow.pop %v1237
        %v1239 = vmul.f32 %v1193, 1.442695
        %v1240 = vpow.pop %v1239
        %v1241 = vmul.f32 %v1194, 1.442695
        %v1242 = vpow.pop %v1241
        %v1243 = vmul.f32 %v1195, 1.442695
        %v1244 = vpow.pop %v1243
        %v1245 = vmul.f32 %v1196, 1.442695
        %v1246 = vpow.pop %v1245
        %v1247 = vmul.f32 %v1197, 1.442695
        %v1248 = vpow.pop %v1247
        %v1249 = vmul.f32 %v1198, 1.442695
        %v1250 = vpow.pop %v1249
        %v1251 = vmul.f32 %v1199, 1.442695
        %v1252 = vpow.pop %v1251
        %v1253 = vmul.f32 %v1200, 1.442695
        %v1254 = vpow.pop %v1253
        %v1255 = vmul.f32 %v1201, 1.442695
        %v1256 = vpow.pop %v1255
        %v1257 = vmul.f32 %v1202, 1.442695
        %v1258 = vpow.pop %v1257
        %v1259 = vmul.f32 %v1203, 1.442695
        %v1260 = vpow.pop %v1259
        %v1261 = vmul.f32 %v1204, 1.442695
        %v1262 = vpow.pop %v1261
        %v1263 = vmul.f32 %v1205, 1.442695
        %v1264 = vpow.pop %v1263
        %v1265 = vmul.f32 %v1206, 1.442695
        %v1266 = vpow.pop %v1265
        %v1267 = vmul.f32 %v1207, 1.442695
        %v1268 = vpow.pop %v1267
        %v1269 = vmul.f32 %v1208, 1.442695
        %v1270 = vpow.pop %v1269
        %v1271 = vmul.f32 %v1209, 1.442695
        %v1272 = vpow.pop %v1271
        %v1273 = vmul.f32 %v1210, 1.442695
        %v1274 = vpow.pop %v1273
        %v1275 = vsel %vm470, %v1212, 0.0
        %1276 = vadd.xlane.f32.xlu0 %v1275
        %v1277 = vpop.xlane.xlu0 %1276
        %v1278 = vsel %vm470, %v1214, 0.0
        %1279 = vadd.xlane.f32.xlu0 %v1278
        %v1280 = vpop.xlane.xlu0 %1279
        %v1281 = vsel %vm470, %v1216, 0.0
        %1282 = vadd.xlane.f32.xlu0 %v1281
        %v1283 = vpop.xlane.xlu0 %1282
        %v1284 = vsel %vm470, %v1218, 0.0
        %1285 = vadd.xlane.f32.xlu0 %v1284
        %v1286 = vpop.xlane.xlu0 %1285
        %v1287 = vsel %vm470, %v1220, 0.0
        %1288 = vadd.xlane.f32.xlu0 %v1287
        %v1289 = vpop.xlane.xlu0 %1288
        %v1290 = vsel %vm470, %v1222, 0.0
        %1291 = vadd.xlane.f32.xlu0 %v1290
        %v1292 = vpop.xlane.xlu0 %1291
        %v1293 = vsel %vm470, %v1224, 0.0
        %1294 = vadd.xlane.f32.xlu0 %v1293
        %v1295 = vpop.xlane.xlu0 %1294
        %v1296 = vsel %vm470, %v1226, 0.0
        %1297 = vadd.xlane.f32.xlu0 %v1296
        %v1298 = vpop.xlane.xlu0 %1297
        %v1299 = vsel %vm470, %v1228, 0.0
        %1300 = vadd.xlane.f32.xlu0 %v1299
        %v1301 = vpop.xlane.xlu0 %1300
        %v1302 = vsel %vm470, %v1230, 0.0
        %1303 = vadd.xlane.f32.xlu0 %v1302
        %v1304 = vpop.xlane.xlu0 %1303
        %v1305 = vsel %vm470, %v1232, 0.0
        %1306 = vadd.xlane.f32.xlu0 %v1305
        %v1307 = vpop.xlane.xlu0 %1306
        %v1308 = vsel %vm470, %v1234, 0.0
        %1309 = vadd.xlane.f32.xlu0 %v1308
        %v1310 = vpop.xlane.xlu0 %1309
        %v1311 = vsel %vm470, %v1236, 0.0
        %1312 = vadd.xlane.f32.xlu0 %v1311
        %v1313 = vpop.xlane.xlu0 %1312
        %v1314 = vsel %vm470, %v1238, 0.0
        %1315 = vadd.xlane.f32.xlu0 %v1314
        %v1316 = vpop.xlane.xlu0 %1315
        %v1317 = vsel %vm470, %v1240, 0.0
        %1318 = vadd.xlane.f32.xlu0 %v1317
        %v1319 = vpop.xlane.xlu0 %1318
        %v1320 = vsel %vm470, %v1242, 0.0
        %1321 = vadd.xlane.f32.xlu0 %v1320
        %v1322 = vpop.xlane.xlu0 %1321
        %v1323 = vsel %vm470, %v1244, 0.0
        %1324 = vadd.xlane.f32.xlu0 %v1323
        %v1325 = vpop.xlane.xlu0 %1324
        %v1326 = vsel %vm470, %v1246, 0.0
        %1327 = vadd.xlane.f32.xlu0 %v1326
        %v1328 = vpop.xlane.xlu0 %1327
        %v1329 = vsel %vm470, %v1248, 0.0
        %1330 = vadd.xlane.f32.xlu0 %v1329
        %v1331 = vpop.xlane.xlu0 %1330
        %v1332 = vsel %vm470, %v1250, 0.0
        %1333 = vadd.xlane.f32.xlu0 %v1332
        %v1334 = vpop.xlane.xlu0 %1333
        %v1335 = vsel %vm470, %v1252, 0.0
        %1336 = vadd.xlane.f32.xlu0 %v1335
        %v1337 = vpop.xlane.xlu0 %1336
        %v1338 = vsel %vm470, %v1254, 0.0
        %1339 = vadd.xlane.f32.xlu0 %v1338
        %v1340 = vpop.xlane.xlu0 %1339
        %v1341 = vsel %vm470, %v1256, 0.0
        %1342 = vadd.xlane.f32.xlu0 %v1341
        %v1343 = vpop.xlane.xlu0 %1342
        %v1344 = vsel %vm470, %v1258, 0.0
        %1345 = vadd.xlane.f32.xlu0 %v1344
        %v1346 = vpop.xlane.xlu0 %1345
        %v1347 = vsel %vm470, %v1260, 0.0
        %1348 = vadd.xlane.f32.xlu0 %v1347
        %v1349 = vpop.xlane.xlu0 %1348
        %v1350 = vsel %vm470, %v1262, 0.0
        %1351 = vadd.xlane.f32.xlu0 %v1350
        %v1352 = vpop.xlane.xlu0 %1351
        %v1353 = vsel %vm470, %v1264, 0.0
        %1354 = vadd.xlane.f32.xlu0 %v1353
        %v1355 = vpop.xlane.xlu0 %1354
        %v1356 = vsel %vm470, %v1266, 0.0
        %1357 = vadd.xlane.f32.xlu0 %v1356
        %v1358 = vpop.xlane.xlu0 %1357
        %v1359 = vsel %vm470, %v1268, 0.0
        %1360 = vadd.xlane.f32.xlu0 %v1359
        %v1361 = vpop.xlane.xlu0 %1360
        %v1362 = vsel %vm470, %v1270, 0.0
        %1363 = vadd.xlane.f32.xlu0 %v1362
        %v1364 = vpop.xlane.xlu0 %1363
        %v1365 = vsel %vm470, %v1272, 0.0
        %1366 = vadd.xlane.f32.xlu0 %v1365
        %v1367 = vpop.xlane.xlu0 %1366
        %v1368 = vsel %vm470, %v1274, 0.0
        %1369 = vadd.xlane.f32.xlu0 %v1368
        %v1370 = vpop.xlane.xlu0 %1369
        %v1371 = vrcp.pop %v1277
        %v1372 = vmul.f32 1.25, %v1371
        %v1373 = vrcp.pop %v1280
        %v1374 = vmul.f32 1.25, %v1373
        %v1375 = vrcp.pop %v1283
        %v1376 = vmul.f32 1.25, %v1375
        %v1377 = vrcp.pop %v1286
        %v1378 = vmul.f32 1.25, %v1377
        %v1379 = vrcp.pop %v1289
        %v1380 = vmul.f32 1.25, %v1379
        %v1381 = vrcp.pop %v1292
        %v1382 = vmul.f32 1.25, %v1381
        %v1383 = vrcp.pop %v1295
        %v1384 = vmul.f32 1.25, %v1383
        %v1385 = vrcp.pop %v1298
        %v1386 = vmul.f32 1.25, %v1385
        %v1387 = vrcp.pop %v1301
        %v1388 = vmul.f32 1.25, %v1387
        %v1389 = vrcp.pop %v1304
        %v1390 = vmul.f32 1.25, %v1389
        %v1391 = vrcp.pop %v1307
        %v1392 = vmul.f32 1.25, %v1391
        %v1393 = vrcp.pop %v1310
        %v1394 = vmul.f32 1.25, %v1393
        %v1395 = vrcp.pop %v1313
        %v1396 = vmul.f32 1.25, %v1395
        %v1397 = vrcp.pop %v1316
        %v1398 = vmul.f32 1.25, %v1397
        %v1399 = vrcp.pop %v1319
        %v1400 = vmul.f32 1.25, %v1399
        %v1401 = vrcp.pop %v1322
        %v1402 = vmul.f32 1.25, %v1401
        %v1403 = vrcp.pop %v1325
        %v1404 = vmul.f32 1.25, %v1403
        %v1405 = vrcp.pop %v1328
        %v1406 = vmul.f32 1.25, %v1405
        %v1407 = vrcp.pop %v1331
        %v1408 = vmul.f32 1.25, %v1407
        %v1409 = vrcp.pop %v1334
        %v1410 = vmul.f32 1.25, %v1409
        %v1411 = vrcp.pop %v1337
        %v1412 = vmul.f32 1.25, %v1411
        %v1413 = vrcp.pop %v1340
        %v1414 = vmul.f32 1.25, %v1413
        %v1415 = vrcp.pop %v1343
        %v1416 = vmul.f32 1.25, %v1415
        %v1417 = vrcp.pop %v1346
        %v1418 = vmul.f32 1.25, %v1417
        %v1419 = vrcp.pop %v1349
        %v1420 = vmul.f32 1.25, %v1419
        %v1421 = vrcp.pop %v1352
        %v1422 = vmul.f32 1.25, %v1421
        %v1423 = vrcp.pop %v1355
        %v1424 = vmul.f32 1.25, %v1423
        %v1425 = vrcp.pop %v1358
        %v1426 = vmul.f32 1.25, %v1425
        %v1427 = vrcp.pop %v1361
        %v1428 = vmul.f32 1.25, %v1427
        %v1429 = vrcp.pop %v1364
        %v1430 = vmul.f32 1.25, %v1429
        %v1431 = vrcp.pop %v1367
        %v1432 = vmul.f32 1.25, %v1431
        %v1433 = vrcp.pop %v1370
        %v1434 = vmul.f32 1.25, %v1433
        %v1435 = vld [vmem:[%s297] sm:$0xff]
        %v1436 = vld [vmem:[%s297 + $0x8] sm:$0xff]
        %v1437 = vld [vmem:[%s297 + $0x10] sm:$0xff]
        %v1438 = vld [vmem:[%s297 + $0x18] sm:$0xff]
        %v1439 = vld [vmem:[%s297 + $0x20] sm:$0xff]
        %v1440 = vld [vmem:[%s297 + $0x28] sm:$0xff]
        %v1441 = vld [vmem:[%s297 + $0x30] sm:$0xff]
        %v1442 = vld [vmem:[%s297 + $0x38] sm:$0xff]
        %v1443 = vld [vmem:[%s297 + $0x40] sm:$0xff]
        %v1444 = vld [vmem:[%s297 + $0x48] sm:$0xff]
        %v1445 = vld [vmem:[%s297 + $0x50] sm:$0xff]
        %v1446 = vld [vmem:[%s297 + $0x58] sm:$0xff]
        %v1447 = vld [vmem:[%s297 + $0x60] sm:$0xff]
        %v1448 = vld [vmem:[%s297 + $0x68] sm:$0xff]
        %v1449 = vld [vmem:[%s297 + $0x70] sm:$0xff]
        %v1450 = vld [vmem:[%s297 + $0x78] sm:$0xff]
        %v1451 = vld [vmem:[%s297 + $0x80] sm:$0xff]
        %v1452 = vld [vmem:[%s297 + $0x88] sm:$0xff]
        %v1453 = vld [vmem:[%s297 + $0x90] sm:$0xff]
        %v1454 = vld [vmem:[%s297 + $0x98] sm:$0xff]
        %v1455 = vld [vmem:[%s297 + $0xa0] sm:$0xff]
        %v1456 = vld [vmem:[%s297 + $0xa8] sm:$0xff]
        %v1457 = vld [vmem:[%s297 + $0xb0] sm:$0xff]
        %v1458 = vld [vmem:[%s297 + $0xb8] sm:$0xff]
        %v1459 = vld [vmem:[%s297 + $0xc0] sm:$0xff]
        %v1460 = vld [vmem:[%s297 + $0xc8] sm:$0xff]
        %v1461 = vld [vmem:[%s297 + $0xd0] sm:$0xff]
        %v1462 = vld [vmem:[%s297 + $0xd8] sm:$0xff]
        %v1463 = vld [vmem:[%s297 + $0xe0] sm:$0xff]
        %v1464 = vld [vmem:[%s297 + $0xe8] sm:$0xff]
        %v1465 = vld [vmem:[%s297 + $0xf0] sm:$0xff]
        %v1466 = vld [vmem:[%s297 + $0xf8] sm:$0xff]
        %vm1467 = vcmp.ge.f32.partialorder %v1435, 0.2
        %vm1468 = vcmp.ge.f32.partialorder %v1436, 0.2
        %vm1469 = vcmp.ge.f32.partialorder %v1437, 0.2
        %vm1470 = vcmp.ge.f32.partialorder %v1438, 0.2
        %vm1471 = vcmp.ge.f32.partialorder %v1439, 0.2
        %vm1472 = vcmp.ge.f32.partialorder %v1440, 0.2
        %vm1473 = vcmp.ge.f32.partialorder %v1441, 0.2
        %vm1474 = vcmp.ge.f32.partialorder %v1442, 0.2
        %vm1475 = vcmp.ge.f32.partialorder %v1443, 0.2
        %vm1476 = vcmp.ge.f32.partialorder %v1444, 0.2
        %vm1477 = vcmp.ge.f32.partialorder %v1445, 0.2
        %vm1478 = vcmp.ge.f32.partialorder %v1446, 0.2
        %vm1479 = vcmp.ge.f32.partialorder %v1447, 0.2
        %vm1480 = vcmp.ge.f32.partialorder %v1448, 0.2
        %vm1481 = vcmp.ge.f32.partialorder %v1449, 0.2
        %vm1482 = vcmp.ge.f32.partialorder %v1450, 0.2
        %vm1483 = vcmp.ge.f32.partialorder %v1451, 0.2
        %vm1484 = vcmp.ge.f32.partialorder %v1452, 0.2
        %vm1485 = vcmp.ge.f32.partialorder %v1453, 0.2
        %vm1486 = vcmp.ge.f32.partialorder %v1454, 0.2
        %vm1487 = vcmp.ge.f32.partialorder %v1455, 0.2
        %vm1488 = vcmp.ge.f32.partialorder %v1456, 0.2
        %vm1489 = vcmp.ge.f32.partialorder %v1457, 0.2
        %vm1490 = vcmp.ge.f32.partialorder %v1458, 0.2
        %vm1491 = vcmp.ge.f32.partialorder %v1459, 0.2
        %vm1492 = vcmp.ge.f32.partialorder %v1460, 0.2
        %vm1493 = vcmp.ge.f32.partialorder %v1461, 0.2
        %vm1494 = vcmp.ge.f32.partialorder %v1462, 0.2
        %vm1495 = vcmp.ge.f32.partialorder %v1463, 0.2
        %vm1496 = vcmp.ge.f32.partialorder %v1464, 0.2
        %vm1497 = vcmp.ge.f32.partialorder %v1465, 0.2
        %vm1498 = vcmp.ge.f32.partialorder %v1466, 0.2
        %v1499 = vmul.f32 %v1212, %v1372
        %v1500 = vmul.f32 %v1214, %v1374
        %v1501 = vmul.f32 %v1216, %v1376
        %v1502 = vmul.f32 %v1218, %v1378
        %v1503 = vmul.f32 %v1220, %v1380
        %v1504 = vmul.f32 %v1222, %v1382
        %v1505 = vmul.f32 %v1224, %v1384
        %v1506 = vmul.f32 %v1226, %v1386
        %v1507 = vmul.f32 %v1228, %v1388
        %v1508 = vmul.f32 %v1230, %v1390
        %v1509 = vmul.f32 %v1232, %v1392
        %v1510 = vmul.f32 %v1234, %v1394
        %v1511 = vmul.f32 %v1236, %v1396
        %v1512 = vmul.f32 %v1238, %v1398
        %v1513 = vmul.f32 %v1240, %v1400
        %v1514 = vmul.f32 %v1242, %v1402
        %v1515 = vmul.f32 %v1244, %v1404
        %v1516 = vmul.f32 %v1246, %v1406
        %v1517 = vmul.f32 %v1248, %v1408
        %v1518 = vmul.f32 %v1250, %v1410
        %v1519 = vmul.f32 %v1252, %v1412
        %v1520 = vmul.f32 %v1254, %v1414
        %v1521 = vmul.f32 %v1256, %v1416
        %v1522 = vmul.f32 %v1258, %v1418
        %v1523 = vmul.f32 %v1260, %v1420
        %v1524 = vmul.f32 %v1262, %v1422
        %v1525 = vmul.f32 %v1264, %v1424
        %v1526 = vmul.f32 %v1266, %v1426
        %v1527 = vmul.f32 %v1268, %v1428
        %v1528 = vmul.f32 %v1270, %v1430
        %v1529 = vmul.f32 %v1272, %v1432
        %v1530 = vmul.f32 %v1274, %v1434
        %v1531 = vsel %vm1467, %v1499, 0.0
        %v1532 = vsel %vm1468, %v1500, 0.0
        %v1533 = vsel %vm1469, %v1501, 0.0
        %v1534 = vsel %vm1470, %v1502, 0.0
        %v1535 = vsel %vm1471, %v1503, 0.0
        %v1536 = vsel %vm1472, %v1504, 0.0
        %v1537 = vsel %vm1473, %v1505, 0.0
        %v1538 = vsel %vm1474, %v1506, 0.0
        %v1539 = vsel %vm1475, %v1507, 0.0
        %v1540 = vsel %vm1476, %v1508, 0.0
        %v1541 = vsel %vm1477, %v1509, 0.0
        %v1542 = vsel %vm1478, %v1510, 0.0
        %v1543 = vsel %vm1479, %v1511, 0.0
        %v1544 = vsel %vm1480, %v1512, 0.0
        %v1545 = vsel %vm1481, %v1513, 0.0
        %v1546 = vsel %vm1482, %v1514, 0.0
        %v1547 = vsel %vm1483, %v1515, 0.0
        %v1548 = vsel %vm1484, %v1516, 0.0
        %v1549 = vsel %vm1485, %v1517, 0.0
        %v1550 = vsel %vm1486, %v1518, 0.0
        %v1551 = vsel %vm1487, %v1519, 0.0
        %v1552 = vsel %vm1488, %v1520, 0.0
        %v1553 = vsel %vm1489, %v1521, 0.0
        %v1554 = vsel %vm1490, %v1522, 0.0
        %v1555 = vsel %vm1491, %v1523, 0.0
        %v1556 = vsel %vm1492, %v1524, 0.0
        %v1557 = vsel %vm1493, %v1525, 0.0
        %v1558 = vsel %vm1494, %v1526, 0.0
        %v1559 = vsel %vm1495, %v1527, 0.0
        %v1560 = vsel %vm1496, %v1528, 0.0
        %v1561 = vsel %vm1497, %v1529, 0.0
        %v1562 = vsel %vm1498, %v1530, 0.0
        %v1564 = vsel %vm470, %v1531, 0
        %v1567 = vsel %vm470, %v1532, 0
        %v1570 = vsel %vm470, %v1533, 0
        %v1573 = vsel %vm470, %v1534, 0
        %v1576 = vsel %vm470, %v1535, 0
        %v1579 = vsel %vm470, %v1536, 0
        %v1582 = vsel %vm470, %v1537, 0
        %v1585 = vsel %vm470, %v1538, 0
        %1587 = vmatprep.subr.mxu0 0.0
        %1588 = vmatpush1.msra.mxu0 %v438
        %1589 = vmatprep.subr.mxu0 0.0
        %1590 = vmatpush1.msra.mxu0 %v439
        %1591 = vmatprep.subr.mxu0 0.0
        %1592 = vmatpush1.msra.mxu0 %v440
        %1593 = vmatprep.subr.mxu0 0.0
        %1594 = vmatpush1.msra.mxu0 %v441
        %1595 = vmatprep.subr.mxu0 0.0
        %1596 = vmatpush1.msra.mxu0 %v442
        %1597 = vmatprep.subr.mxu0 0.0
        %1598 = vmatpush1.msra.mxu0 %v443
        %1599 = vmatprep.subr.mxu0 0.0
        %1600 = vmatpush1.msra.mxu0 %v444
        %1601 = vmatprep.subr.mxu0 0.0
        %1602 = vmatpush1.msra.mxu0 %v445
        %1603 = vmatprep.subr.mxu0 0.0
        %1604 = vmatpush1.msra.mxu0 0.0
        %1605 = vmatprep.subr.mxu0 0.0
        %1606 = vmatpush1.msra.mxu0 0.0
        %1607 = vmatprep.subr.mxu0 0.0
        %1608 = vmatpush1.msra.mxu0 0.0
        %1609 = vmatprep.subr.mxu0 0.0
        %1610 = vmatpush1.msra.mxu0 0.0
        %1611 = vmatprep.subr.mxu0 0.0
        %1612 = vmatpush1.msra.mxu0 0.0
        %1613 = vmatprep.subr.mxu0 0.0
        %1614 = vmatpush1.msra.mxu0 0.0
        %1615 = vmatprep.subr.mxu0 0.0
        %1616 = vmatpush1.msra.mxu0 0.0
        %1617 = vmatprep.subr.mxu0 0.0
        %1618 = vmatpush1.msra.mxu0 0.0
        %1619 = vmatprep.subr.mxu0 0.0
        %1620 = vmatpush1.msra.mxu0 0.0
        %1621 = vmatprep.subr.mxu0 0.0
        %1622 = vmatpush1.msra.mxu0 0.0
        %1623 = vmatprep.subr.mxu0 0.0
        %1624 = vmatpush1.msra.mxu0 0.0
        %1625 = vmatprep.subr.mxu0 0.0
        %1626 = vmatpush1.msra.mxu0 0.0
        %1627 = vmatprep.subr.mxu0 0.0
        %1628 = vmatpush1.msra.mxu0 0.0
        %1629 = vmatprep.subr.mxu0 0.0
        %1630 = vmatpush1.msra.mxu0 0.0
        %1631 = vmatprep.subr.mxu0 0.0
        %1632 = vmatpush1.msra.mxu0 0.0
        %1633 = vmatprep.subr.mxu0 0.0
        %1634 = vmatpush1.msra.mxu0 0.0
        %1635 = vmatprep.subr.mxu0 0.0
        %1636 = vmatpush1.msra.mxu0 0.0
        %1637 = vmatprep.subr.mxu0 0.0
        %1638 = vmatpush1.msra.mxu0 0.0
        %1639 = vmatprep.subr.mxu0 0.0
        %1640 = vmatpush1.msra.mxu0 0.0
        %1641 = vmatprep.subr.mxu0 0.0
        %1642 = vmatpush1.msra.mxu0 0.0
        %1643 = vmatprep.subr.mxu0 0.0
        %1644 = vmatpush1.msra.mxu0 0.0
        %1645 = vmatprep.subr.mxu0 0.0
        %1646 = vmatpush1.msra.mxu0 0.0
        %1647 = vmatprep.subr.mxu0 0.0
        %1648 = vmatpush1.msra.mxu0 0.0
        %1649 = vmatprep.subr.mxu0 0.0
        %1650 = vmatpush1.msra.mxu0 0.0
        %1651 = vmatprep.mubr.f32.mxu0 0.0
        %1652 = vmatmul.mubr.f32.gmra.mrb[0].mxu0 %v1564
        %v1653 = vpop.f32.mrb[0].mxu0
        %v1654 = vadd.f32 0.0, %v1653
        %v1655 = vpop.f32.mrb[0].mxu0
        %1656 = vmatprep.mubr.f32.mxu0 0.0
        %1657 = vmatmul.mubr.f32.gmra.mrb[0].mxu0 %v1567
        %v1658 = vpop.f32.mrb[0].mxu0
        %v1659 = vadd.f32 0.0, %v1658
        %v1660 = vpop.f32.mrb[0].mxu0
        %1661 = vmatprep.mubr.f32.mxu0 0.0
        %1662 = vmatmul.mubr.f32.gmra.mrb[0].mxu0 %v1570
        %v1663 = vpop.f32.mrb[0].mxu0
        %v1664 = vadd.f32 0.0, %v1663
        %v1665 = vpop.f32.mrb[0].mxu0
        %1666 = vmatprep.mubr.f32.mxu0 0.0
        %1667 = vmatmul.mubr.f32.gmra.mrb[0].mxu0 %v1573
        %v1668 = vpop.f32.mrb[0].mxu0
        %v1669 = vadd.f32 0.0, %v1668
        %v1670 = vpop.f32.mrb[0].mxu0
        %1671 = vmatprep.mubr.f32.mxu0 0.0
        %1672 = vmatmul.mubr.f32.gmra.mrb[0].mxu0 %v1576
        %v1673 = vpop.f32.mrb[0].mxu0
        %v1674 = vadd.f32 0.0, %v1673
        %v1675 = vpop.f32.mrb[0].mxu0
        %1676 = vmatprep.mubr.f32.mxu0 0.0
        %1677 = vmatmul.mubr.f32.gmra.mrb[0].mxu0 %v1579
        %v1678 = vpop.f32.mrb[0].mxu0
        %v1679 = vadd.f32 0.0, %v1678
        %v1680 = vpop.f32.mrb[0].mxu0
        %1681 = vmatprep.mubr.f32.mxu0 0.0
        %1682 = vmatmul.mubr.f32.gmra.mrb[0].mxu0 %v1582
        %v1683 = vpop.f32.mrb[0].mxu0
        %v1684 = vadd.f32 0.0, %v1683
        %v1685 = vpop.f32.mrb[0].mxu0
        %1686 = vmatprep.mubr.f32.mxu0 0.0
        %1687 = vmatmul.mubr.f32.gmra.mrb[0].mxu0 %v1585
        %v1688 = vpop.f32.mrb[0].mxu0
        %v1689 = vadd.f32 0.0, %v1688
        %v1690 = vpop.f32.mrb[0].mxu0
        %1691 = vdwg.mxu0
        %v1693 = vsel %vm470, %v1539, 0
        %v1696 = vsel %vm470, %v1540, 0
        %v1699 = vsel %vm470, %v1541, 0
        %v1702 = vsel %vm470, %v1542, 0
        %v1705 = vsel %vm470, %v1543, 0
        %v1708 = vsel %vm470, %v1544, 0
        %v1711 = vsel %vm470, %v1545, 0
        %v1714 = vsel %vm470, %v1546, 0
        %1716 = vmatprep.subr.mxu0 0.0
        %1717 = vmatpush1.msra.mxu0 %v446
        %1718 = vmatprep.subr.mxu0 0.0
        %1719 = vmatpush1.msra.mxu0 %v447
        %1720 = vmatprep.subr.mxu0 0.0
        %1721 = vmatpush1.msra.mxu0 %v448
        %1722 = vmatprep.subr.mxu0 0.0
        %1723 = vmatpush1.msra.mxu0 %v449
        %1724 = vmatprep.subr.mxu0 0.0
        %1725 = vmatpush1.msra.mxu0 %v450
        %1726 = vmatprep.subr.mxu0 0.0
        %1727 = vmatpush1.msra.mxu0 %v451
        %1728 = vmatprep.subr.mxu0 0.0
        %1729 = vmatpush1.msra.mxu0 %v452
        %1730 = vmatprep.subr.mxu0 0.0
        %1731 = vmatpush1.msra.mxu0 %v453
        %1732 = vmatprep.subr.mxu0 0.0
        %1733 = vmatpush1.msra.mxu0 0.0
        %1734 = vmatprep.subr.mxu0 0.0
        %1735 = vmatpush1.msra.mxu0 0.0
        %1736 = vmatprep.subr.mxu0 0.0
        %1737 = vmatpush1.msra.mxu0 0.0
        %1738 = vmatprep.subr.mxu0 0.0
        %1739 = vmatpush1.msra.mxu0 0.0
        %1740 = vmatprep.subr.mxu0 0.0
        %1741 = vmatpush1.msra.mxu0 0.0
        %1742 = vmatprep.subr.mxu0 0.0
        %1743 = vmatpush1.msra.mxu0 0.0
        %1744 = vmatprep.subr.mxu0 0.0
        %1745 = vmatpush1.msra.mxu0 0.0
        %1746 = vmatprep.subr.mxu0 0.0
        %1747 = vmatpush1.msra.mxu0 0.0
        %1748 = vmatprep.subr.mxu0 0.0
        %1749 = vmatpush1.msra.mxu0 0.0
        %1750 = vmatprep.subr.mxu0 0.0
        %1751 = vmatpush1.msra.mxu0 0.0
        %1752 = vmatprep.subr.mxu0 0.0
        %1753 = vmatpush1.msra.mxu0 0.0
        %1754 = vmatprep.subr.mxu0 0.0
        %1755 = vmatpush1.msra.mxu0 0.0
        %1756 = vmatprep.subr.mxu0 0.0
        %1757 = vmatpush1.msra.mxu0 0.0
        %1758 = vmatprep.subr.mxu0 0.0
        %1759 = vmatpush1.msra.mxu0 0.0
        %1760 = vmatprep.subr.mxu0 0.0
        %1761 = vmatpush1.msra.mxu0 0.0
        %1762 = vmatprep.subr.mxu0 0.0
        %1763 = vmatpush1.msra.mxu0 0.0
        %1764 = vmatprep.subr.mxu0 0.0
        %1765 = vmatpush1.msra.mxu0 0.0
        %1766 = vmatprep.subr.mxu0 0.0
        %1767 = vmatpush1.msra.mxu0 0.0
        %1768 = vmatprep.subr.mxu0 0.0
        %1769 = vmatpush1.msra.mxu0 0.0
        %1770 = vmatprep.subr.mxu0 0.0
        %1771 = vmatpush1.msra.mxu0 0.0
        %1772 = vmatprep.subr.mxu0 0.0
        %1773 = vmatpush1.msra.mxu0 0.0
        %1774 = vmatprep.subr.mxu0 0.0
        %1775 = vmatpush1.msra.mxu0 0.0
        %1776 = vmatprep.subr.mxu0 0.0
        %1777 = vmatpush1.msra.mxu0 0.0
        %1778 = vmatprep.subr.mxu0 0.0
        %1779 = vmatpush1.msra.mxu0 0.0
        %1780 = vmatprep.mubr.f32.mxu0 0.0
        %1781 = vmatmul.mubr.f32.gmra.mrb[0].mxu0 %v1693
        %v1782 = vpop.f32.mrb[0].mxu0
        %v1783 = vadd.f32 0.0, %v1782
        %v1784 = vpop.f32.mrb[0].mxu0
        %1785 = vmatprep.mubr.f32.mxu0 0.0
        %1786 = vmatmul.mubr.f32.gmra.mrb[0].mxu0 %v1696
        %v1787 = vpop.f32.mrb[0].mxu0
        %v1788 = vadd.f32 0.0, %v1787
        %v1789 = vpop.f32.mrb[0].mxu0
        %1790 = vmatprep.mubr.f32.mxu0 0.0
        %1791 = vmatmul.mubr.f32.gmra.mrb[0].mxu0 %v1699
        %v1792 = vpop.f32.mrb[0].mxu0
        %v1793 = vadd.f32 0.0, %v1792
        %v1794 = vpop.f32.mrb[0].mxu0
        %1795 = vmatprep.mubr.f32.mxu0 0.0
        %1796 = vmatmul.mubr.f32.gmra.mrb[0].mxu0 %v1702
        %v1797 = vpop.f32.mrb[0].mxu0
        %v1798 = vadd.f32 0.0, %v1797
        %v1799 = vpop.f32.mrb[0].mxu0
        %1800 = vmatprep.mubr.f32.mxu0 0.0
        %1801 = vmatmul.mubr.f32.gmra.mrb[0].mxu0 %v1705
        %v1802 = vpop.f32.mrb[0].mxu0
        %v1803 = vadd.f32 0.0, %v1802
        %v1804 = vpop.f32.mrb[0].mxu0
        %1805 = vmatprep.mubr.f32.mxu0 0.0
        %1806 = vmatmul.mubr.f32.gmra.mrb[0].mxu0 %v1708
        %v1807 = vpop.f32.mrb[0].mxu0
        %v1808 = vadd.f32 0.0, %v1807
        %v1809 = vpop.f32.mrb[0].mxu0
        %1810 = vmatprep.mubr.f32.mxu0 0.0
        %1811 = vmatmul.mubr.f32.gmra.mrb[0].mxu0 %v1711
        %v1812 = vpop.f32.mrb[0].mxu0
        %v1813 = vadd.f32 0.0, %v1812
        %v1814 = vpop.f32.mrb[0].mxu0
        %1815 = vmatprep.mubr.f32.mxu0 0.0
        %1816 = vmatmul.mubr.f32.gmra.mrb[0].mxu0 %v1714
        %v1817 = vpop.f32.mrb[0].mxu0
        %v1818 = vadd.f32 0.0, %v1817
        %v1819 = vpop.f32.mrb[0].mxu0
        %1820 = vdwg.mxu0
        %v1822 = vsel %vm470, %v1547, 0
        %v1825 = vsel %vm470, %v1548, 0
        %v1828 = vsel %vm470, %v1549, 0
        %v1831 = vsel %vm470, %v1550, 0
        %v1834 = vsel %vm470, %v1551, 0
        %v1837 = vsel %vm470, %v1552, 0
        %v1840 = vsel %vm470, %v1553, 0
        %v1843 = vsel %vm470, %v1554, 0
        %1845 = vmatprep.subr.mxu0 0.0
        %1846 = vmatpush1.msra.mxu0 %v454
        %1847 = vmatprep.subr.mxu0 0.0
        %1848 = vmatpush1.msra.mxu0 %v455
        %1849 = vmatprep.subr.mxu0 0.0
        %1850 = vmatpush1.msra.mxu0 %v456
        %1851 = vmatprep.subr.mxu0 0.0
        %1852 = vmatpush1.msra.mxu0 %v457
        %1853 = vmatprep.subr.mxu0 0.0
        %1854 = vmatpush1.msra.mxu0 %v458
        %1855 = vmatprep.subr.mxu0 0.0
        %1856 = vmatpush1.msra.mxu0 %v459
        %1857 = vmatprep.subr.mxu0 0.0
        %1858 = vmatpush1.msra.mxu0 %v460
        %1859 = vmatprep.subr.mxu0 0.0
        %1860 = vmatpush1.msra.mxu0 %v461
        %1861 = vmatprep.subr.mxu0 0.0
        %1862 = vmatpush1.msra.mxu0 0.0
        %1863 = vmatprep.subr.mxu0 0.0
        %1864 = vmatpush1.msra.mxu0 0.0
        %1865 = vmatprep.subr.mxu0 0.0
        %1866 = vmatpush1.msra.mxu0 0.0
        %1867 = vmatprep.subr.mxu0 0.0
        %1868 = vmatpush1.msra.mxu0 0.0
        %1869 = vmatprep.subr.mxu0 0.0
        %1870 = vmatpush1.msra.mxu0 0.0
        %1871 = vmatprep.subr.mxu0 0.0
        %1872 = vmatpush1.msra.mxu0 0.0
        %1873 = vmatprep.subr.mxu0 0.0
        %1874 = vmatpush1.msra.mxu0 0.0
        %1875 = vmatprep.subr.mxu0 0.0
        %1876 = vmatpush1.msra.mxu0 0.0
        %1877 = vmatprep.subr.mxu0 0.0
        %1878 = vmatpush1.msra.mxu0 0.0
        %1879 = vmatprep.subr.mxu0 0.0
        %1880 = vmatpush1.msra.mxu0 0.0
        %1881 = vmatprep.subr.mxu0 0.0
        %1882 = vmatpush1.msra.mxu0 0.0
        %1883 = vmatprep.subr.mxu0 0.0
        %1884 = vmatpush1.msra.mxu0 0.0
        %1885 = vmatprep.subr.mxu0 0.0
        %1886 = vmatpush1.msra.mxu0 0.0
        %1887 = vmatprep.subr.mxu0 0.0
        %1888 = vmatpush1.msra.mxu0 0.0
        %1889 = vmatprep.subr.mxu0 0.0
        %1890 = vmatpush1.msra.mxu0 0.0
        %1891 = vmatprep.subr.mxu0 0.0
        %1892 = vmatpush1.msra.mxu0 0.0
        %1893 = vmatprep.subr.mxu0 0.0
        %1894 = vmatpush1.msra.mxu0 0.0
        %1895 = vmatprep.subr.mxu0 0.0
        %1896 = vmatpush1.msra.mxu0 0.0
        %1897 = vmatprep.subr.mxu0 0.0
        %1898 = vmatpush1.msra.mxu0 0.0
        %1899 = vmatprep.subr.mxu0 0.0
        %1900 = vmatpush1.msra.mxu0 0.0
        %1901 = vmatprep.subr.mxu0 0.0
        %1902 = vmatpush1.msra.mxu0 0.0
        %1903 = vmatprep.subr.mxu0 0.0
        %1904 = vmatpush1.msra.mxu0 0.0
        %1905 = vmatprep.subr.mxu0 0.0
        %1906 = vmatpush1.msra.mxu0 0.0
        %1907 = vmatprep.subr.mxu0 0.0
        %1908 = vmatpush1.msra.mxu0 0.0
        %1909 = vmatprep.mubr.f32.mxu0 0.0
        %1910 = vmatmul.mubr.f32.gmra.mrb[0].mxu0 %v1822
        %v1911 = vpop.f32.mrb[0].mxu0
        %v1912 = vadd.f32 0.0, %v1911
        %v1913 = vpop.f32.mrb[0].mxu0
        %1914 = vmatprep.mubr.f32.mxu0 0.0
        %1915 = vmatmul.mubr.f32.gmra.mrb[0].mxu0 %v1825
        %v1916 = vpop.f32.mrb[0].mxu0
        %v1917 = vadd.f32 0.0, %v1916
        %v1918 = vpop.f32.mrb[0].mxu0
        %1919 = vmatprep.mubr.f32.mxu0 0.0
        %1920 = vmatmul.mubr.f32.gmra.mrb[0].mxu0 %v1828
        %v1921 = vpop.f32.mrb[0].mxu0
        %v1922 = vadd.f32 0.0, %v1921
        %v1923 = vpop.f32.mrb[0].mxu0
        %1924 = vmatprep.mubr.f32.mxu0 0.0
        %1925 = vmatmul.mubr.f32.gmra.mrb[0].mxu0 %v1831
        %v1926 = vpop.f32.mrb[0].mxu0
        %v1927 = vadd.f32 0.0, %v1926
        %v1928 = vpop.f32.mrb[0].mxu0
        %1929 = vmatprep.mubr.f32.mxu0 0.0
        %1930 = vmatmul.mubr.f32.gmra.mrb[0].mxu0 %v1834
        %v1931 = vpop.f32.mrb[0].mxu0
        %v1932 = vadd.f32 0.0, %v1931
        %v1933 = vpop.f32.mrb[0].mxu0
        %1934 = vmatprep.mubr.f32.mxu0 0.0
        %1935 = vmatmul.mubr.f32.gmra.mrb[0].mxu0 %v1837
        %v1936 = vpop.f32.mrb[0].mxu0
        %v1937 = vadd.f32 0.0, %v1936
        %v1938 = vpop.f32.mrb[0].mxu0
        %1939 = vmatprep.mubr.f32.mxu0 0.0
        %1940 = vmatmul.mubr.f32.gmra.mrb[0].mxu0 %v1840
        %v1941 = vpop.f32.mrb[0].mxu0
        %v1942 = vadd.f32 0.0, %v1941
        %v1943 = vpop.f32.mrb[0].mxu0
        %1944 = vmatprep.mubr.f32.mxu0 0.0
        %1945 = vmatmul.mubr.f32.gmra.mrb[0].mxu0 %v1843
        %v1946 = vpop.f32.mrb[0].mxu0
        %v1947 = vadd.f32 0.0, %v1946
        %v1948 = vpop.f32.mrb[0].mxu0
        %1949 = vdwg.mxu0
        %v1951 = vsel %vm470, %v1555, 0
        %v1954 = vsel %vm470, %v1556, 0
        %v1957 = vsel %vm470, %v1557, 0
        %v1960 = vsel %vm470, %v1558, 0
        %v1963 = vsel %vm470, %v1559, 0
        %v1966 = vsel %vm470, %v1560, 0
        %v1969 = vsel %vm470, %v1561, 0
        %v1972 = vsel %vm470, %v1562, 0
        %1974 = vmatprep.subr.mxu0 0.0
        %1975 = vmatpush1.msra.mxu0 %v462
        %1976 = vmatprep.subr.mxu0 0.0
        %1977 = vmatpush1.msra.mxu0 %v463
        %1978 = vmatprep.subr.mxu0 0.0
        %1979 = vmatpush1.msra.mxu0 %v464
        %1980 = vmatprep.subr.mxu0 0.0
        %1981 = vmatpush1.msra.mxu0 %v465
        %1982 = vmatprep.subr.mxu0 0.0
        %1983 = vmatpush1.msra.mxu0 %v466
        %1984 = vmatprep.subr.mxu0 0.0
        %1985 = vmatpush1.msra.mxu0 %v467
        %1986 = vmatprep.subr.mxu0 0.0
        %1987 = vmatpush1.msra.mxu0 %v468
        %1988 = vmatprep.subr.mxu0 0.0
        %1989 = vmatpush1.msra.mxu0 %v469
        %1990 = vmatprep.subr.mxu0 0.0
        %1991 = vmatpush1.msra.mxu0 0.0
        %1992 = vmatprep.subr.mxu0 0.0
        %1993 = vmatpush1.msra.mxu0 0.0
        %1994 = vmatprep.subr.mxu0 0.0
        %1995 = vmatpush1.msra.mxu0 0.0
        %1996 = vmatprep.subr.mxu0 0.0
        %1997 = vmatpush1.msra.mxu0 0.0
        %1998 = vmatprep.subr.mxu0 0.0
        %1999 = vmatpush1.msra.mxu0 0.0
        %2000 = vmatprep.subr.mxu0 0.0
        %2001 = vmatpush1.msra.mxu0 0.0
        %2002 = vmatprep.subr.mxu0 0.0
        %2003 = vmatpush1.msra.mxu0 0.0
        %2004 = vmatprep.subr.mxu0 0.0
        %2005 = vmatpush1.msra.mxu0 0.0
        %2006 = vmatprep.subr.mxu0 0.0
        %2007 = vmatpush1.msra.mxu0 0.0
        %2008 = vmatprep.subr.mxu0 0.0
        %2009 = vmatpush1.msra.mxu0 0.0
        %2010 = vmatprep.subr.mxu0 0.0
        %2011 = vmatpush1.msra.mxu0 0.0
        %2012 = vmatprep.subr.mxu0 0.0
        %2013 = vmatpush1.msra.mxu0 0.0
        %2014 = vmatprep.subr.mxu0 0.0
        %2015 = vmatpush1.msra.mxu0 0.0
        %2016 = vmatprep.subr.mxu0 0.0
        %2017 = vmatpush1.msra.mxu0 0.0
        %2018 = vmatprep.subr.mxu0 0.0
        %2019 = vmatpush1.msra.mxu0 0.0
        %2020 = vmatprep.subr.mxu0 0.0
        %2021 = vmatpush1.msra.mxu0 0.0
        %2022 = vmatprep.subr.mxu0 0.0
        %2023 = vmatpush1.msra.mxu0 0.0
        %2024 = vmatprep.subr.mxu0 0.0
        %2025 = vmatpush1.msra.mxu0 0.0
        %2026 = vmatprep.subr.mxu0 0.0
        %2027 = vmatpush1.msra.mxu0 0.0
        %2028 = vmatprep.subr.mxu0 0.0
        %2029 = vmatpush1.msra.mxu0 0.0
        %2030 = vmatprep.subr.mxu0 0.0
        %2031 = vmatpush1.msra.mxu0 0.0
        %2032 = vmatprep.subr.mxu0 0.0
        %2033 = vmatpush1.msra.mxu0 0.0
        %2034 = vmatprep.subr.mxu0 0.0
        %2035 = vmatpush1.msra.mxu0 0.0
        %2036 = vmatprep.subr.mxu0 0.0
        %2037 = vmatpush1.msra.mxu0 0.0
        %2038 = vmatprep.mubr.f32.mxu0 0.0
        %2039 = vmatmul.mubr.f32.gmra.mrb[0].mxu0 %v1951
        %v2040 = vpop.f32.mrb[0].mxu0
        %v2041 = vadd.f32 0.0, %v2040
        %v2042 = vpop.f32.mrb[0].mxu0
        %2043 = vmatprep.mubr.f32.mxu0 0.0
        %2044 = vmatmul.mubr.f32.gmra.mrb[0].mxu0 %v1954
        %v2045 = vpop.f32.mrb[0].mxu0
        %v2046 = vadd.f32 0.0, %v2045
        %v2047 = vpop.f32.mrb[0].mxu0
        %2048 = vmatprep.mubr.f32.mxu0 0.0
        %2049 = vmatmul.mubr.f32.gmra.mrb[0].mxu0 %v1957
        %v2050 = vpop.f32.mrb[0].mxu0
        %v2051 = vadd.f32 0.0, %v2050
        %v2052 = vpop.f32.mrb[0].mxu0
        %2053 = vmatprep.mubr.f32.mxu0 0.0
        %2054 = vmatmul.mubr.f32.gmra.mrb[0].mxu0 %v1960
        %v2055 = vpop.f32.mrb[0].mxu0
        %v2056 = vadd.f32 0.0, %v2055
        %v2057 = vpop.f32.mrb[0].mxu0
        %2058 = vmatprep.mubr.f32.mxu0 0.0
        %2059 = vmatmul.mubr.f32.gmra.mrb[0].mxu0 %v1963
        %v2060 = vpop.f32.mrb[0].mxu0
        %v2061 = vadd.f32 0.0, %v2060
        %v2062 = vpop.f32.mrb[0].mxu0
        %2063 = vmatprep.mubr.f32.mxu0 0.0
        %2064 = vmatmul.mubr.f32.gmra.mrb[0].mxu0 %v1966
        %v2065 = vpop.f32.mrb[0].mxu0
        %v2066 = vadd.f32 0.0, %v2065
        %v2067 = vpop.f32.mrb[0].mxu0
        %2068 = vmatprep.mubr.f32.mxu0 0.0
        %2069 = vmatmul.mubr.f32.gmra.mrb[0].mxu0 %v1969
        %v2070 = vpop.f32.mrb[0].mxu0
        %v2071 = vadd.f32 0.0, %v2070
        %v2072 = vpop.f32.mrb[0].mxu0
        %2073 = vmatprep.mubr.f32.mxu0 0.0
        %2074 = vmatmul.mubr.f32.gmra.mrb[0].mxu0 %v1972
        %v2075 = vpop.f32.mrb[0].mxu0
        %v2076 = vadd.f32 0.0, %v2075
        %v2077 = vpop.f32.mrb[0].mxu0
        %2078 = vdwg.mxu0
        %2079 = vst.msk [vmem:[%s336] sm:$0xff] %vm470, %v1654
        %2080 = vst.msk [vmem:[%s336 + $0x8] sm:$0xff] %vm470, %v1659
        %2081 = vst.msk [vmem:[%s336 + $0x10] sm:$0xff] %vm470, %v1664
        %2082 = vst.msk [vmem:[%s336 + $0x18] sm:$0xff] %vm470, %v1669
        %2083 = vst.msk [vmem:[%s336 + $0x20] sm:$0xff] %vm470, %v1674
        %2084 = vst.msk [vmem:[%s336 + $0x28] sm:$0xff] %vm470, %v1679
        %2085 = vst.msk [vmem:[%s336 + $0x30] sm:$0xff] %vm470, %v1684
        %2086 = vst.msk [vmem:[%s336 + $0x38] sm:$0xff] %vm470, %v1689
        %2087 = vst.msk [vmem:[%s336 + $0x40] sm:$0xff] %vm470, %v1783
        %2088 = vst.msk [vmem:[%s336 + $0x48] sm:$0xff] %vm470, %v1788
        %2089 = vst.msk [vmem:[%s336 + $0x50] sm:$0xff] %vm470, %v1793
        %2090 = vst.msk [vmem:[%s336 + $0x58] sm:$0xff] %vm470, %v1798
        %2091 = vst.msk [vmem:[%s336 + $0x60] sm:$0xff] %vm470, %v1803
        %2092 = vst.msk [vmem:[%s336 + $0x68] sm:$0xff] %vm470, %v1808
        %2093 = vst.msk [vmem:[%s336 + $0x70] sm:$0xff] %vm470, %v1813
        %2094 = vst.msk [vmem:[%s336 + $0x78] sm:$0xff] %vm470, %v1818
        %2095 = vst.msk [vmem:[%s336 + $0x80] sm:$0xff] %vm470, %v1912
        %2096 = vst.msk [vmem:[%s336 + $0x88] sm:$0xff] %vm470, %v1917
        %2097 = vst.msk [vmem:[%s336 + $0x90] sm:$0xff] %vm470, %v1922
        %2098 = vst.msk [vmem:[%s336 + $0x98] sm:$0xff] %vm470, %v1927
        %2099 = vst.msk [vmem:[%s336 + $0xa0] sm:$0xff] %vm470, %v1932
        %2100 = vst.msk [vmem:[%s336 + $0xa8] sm:$0xff] %vm470, %v1937
        %2101 = vst.msk [vmem:[%s336 + $0xb0] sm:$0xff] %vm470, %v1942
        %2102 = vst.msk [vmem:[%s336 + $0xb8] sm:$0xff] %vm470, %v1947
        %2103 = vst.msk [vmem:[%s336 + $0xc0] sm:$0xff] %vm470, %v2041
        %2104 = vst.msk [vmem:[%s336 + $0xc8] sm:$0xff] %vm470, %v2046
        %2105 = vst.msk [vmem:[%s336 + $0xd0] sm:$0xff] %vm470, %v2051
        %2106 = vst.msk [vmem:[%s336 + $0xd8] sm:$0xff] %vm470, %v2056
        %2107 = vst.msk [vmem:[%s336 + $0xe0] sm:$0xff] %vm470, %v2061
        %2108 = vst.msk [vmem:[%s336 + $0xe8] sm:$0xff] %vm470, %v2066
        %2109 = vst.msk [vmem:[%s336 + $0xf0] sm:$0xff] %vm470, %v2071
        %2110 = vst.msk [vmem:[%s336 + $0xf8] sm:$0xff] %vm470, %v2076
        %s2111 = sand.u32 %s139, 1
        %s2112 = scalar_lea.sflag [#allocation4], %s2111
        %s2113 = sand.u32 %s139, 1
        %s2114 = smul.addr %s2113, 256
        %s2115 = scalar_lea.vmem [#allocation10], %s2114
        // Predicated region
        $region53: #{tpu_custom_call.1} parent=35 // pred_check
          %p2116 = pneg %p149
        $region54: #{tpu_custom_call.1} parent=35 // pred_check_branch
          %2118 = sbr.rel (%p2116) target = $region56
        $region55: #{tpu_custom_call.1} parent=35 // pred_region
          %s2119 = smul.u32 4, %s27
          %s2121 = ssub.s32 4096, 4096
          %2122 = vsyncadd %s2112, %s2121
          %s2123 = smul.addr %s2119, 8
          %s2124 = smul.addr %s2123, 128
          %s2125 = scalar_lea.hbm %s4, %s2124
          %s2126 = sshll.u32 %s2115, 4
          %s2127 = int_to_ptr.vmem [resolvable:$true] %s2126
          %2132 = dma.vmem_to_hbm [thread:$0]  %s2127, 4096, %s2125, %s2112, 128, 128, 8
        $region56: #{tpu_custom_call.1} parent=35 // pred_fallthru
          _
      $region36: #{tpu_custom_call.1} parent=5 // pred_fallthru
        _
      %p2133 = scmp.le.s32.totalorder 2, %s22
      // Predicated region
      $region57: #{tpu_custom_call.1} parent=5 // pred_check
        %p2134 = pneg %p2133
      $region58: #{tpu_custom_call.1} parent=5 // pred_check_branch
        %2136 = sbr.rel (%p2134) target = $region60
      $region59: #{tpu_custom_call.1} parent=5 // pred_region
        %s2137 = ssub.s32 %s22, 2
        // Predicated region
        $region61: #{tpu_custom_call.1} parent=59 // pred_check
          %p2138 = pneg %p155
        $region62: #{tpu_custom_call.1} parent=59 // pred_check_branch
          %2140 = sbr.rel (%p2138) target = $region64
        $region63: #{tpu_custom_call.1} parent=59 // pred_region
          %s2141 = sand.u32 %s140, 1
          %s2142 = scalar_lea.sflag [#allocation4], %s2141
          %s2143 = sand.u32 %s140, 1
          %s2144 = smul.addr %s2143, 256
          %s2145 = scalar_lea.vmem [#allocation10], %s2144
          %2146 = dma.done %s2142, 4096
        $region64: #{tpu_custom_call.1} parent=59 // pred_fallthru
          _
      $region60: #{tpu_custom_call.1} parent=5 // pred_fallthru
        _
    $region6: #{tpu_custom_call.1} parent=1 // loop_footer
      %s26 = sadd.s32 1, %s22
    $region7: #{tpu_custom_call.1} parent=1 // loop_footer_branch
      %21 = sbr.rel target = $region3
    $region8: #{tpu_custom_call.1} parent=1 // loop_exit
      _
    %2147 = vsyncpa [#allocation3], 1
    %s2148 = scalar_lea.sflag [#allocation3], 1
    %2149 = vsyncpa %s2148, 1
    %2150 = vsyncpa [#allocation6], 1
    %s2151 = scalar_lea.sflag [#allocation6], 1
    %2152 = vsyncpa %s2151, 1
    %2153 = vsyncpa [#allocation9], 1
    %s2154 = scalar_lea.sflag [#allocation9], 1
    %2155 = vsyncpa %s2154, 1
    %2156 = vsyncpa [#allocation4], 1
    %s2157 = scalar_lea.sflag [#allocation4], 1
    %2158 = vsyncpa %s2157, 1

</llo_original>
